<compile_context>
chip_gen: v5e
topology: v5e:2x2
jax: 0.10.0
libtpu: 0.0.40
codegen_flags: <defaults>
</compile_context>

<pallas_src>
import functools
import math

import jax
import jax.numpy as jnp
from jax.experimental import pallas as pl
from jax.experimental.pallas import tpu as pltpu


def _layer_norm(v, gamma, beta, eps=1e-5):
    mu = jnp.mean(v, axis=-1, keepdims=True)
    var = jnp.mean((v - mu) ** 2, axis=-1, keepdims=True)
    return (v - mu) * jax.lax.rsqrt(var + eps) * gamma + beta


def transformer_kernel(
    x_ref,
    wq_ref, bq_ref, wk_ref, bk_ref, wv_ref, bv_ref,
    g1_ref, be1_ref, g2_ref, be2_ref,
    w1_ref, b1_ref, w2_ref, b2_ref,
    o_ref,
    act_ref, attn_ref,
    *, heads,
):
    layer = pl.program_id(1)
    n_layers = pl.num_programs(1)
    bblk, seq, embed = x_ref.shape
    rows = bblk * seq
    dh = embed // heads

    # Layer 0: pull this batch block into the resident VMEM activation scratch.
    @pl.when(layer == 0)
    def _():
        act_ref[...] = x_ref[...]

    x3 = act_ref[...]                             # (bblk, S, E) float32
    x = x3.reshape(rows, embed)

    # ---- norm1 + Q/K/V projections (wide bf16 MXU matmuls, f32 accumulate) ----
    h = _layer_norm(x, g1_ref[0], be1_ref[0]).astype(jnp.bfloat16)
    q = jnp.dot(h, wq_ref[0], preferred_element_type=jnp.float32) + bq_ref[0]
    k = jnp.dot(h, wk_ref[0], preferred_element_type=jnp.float32) + bk_ref[0]
    v = jnp.dot(h, wv_ref[0], preferred_element_type=jnp.float32) + bv_ref[0]
    # activation=None -> Identity after the projections.

    qb = q.astype(jnp.bfloat16).reshape(bblk, seq, embed)
    kb = k.astype(jnp.bfloat16).reshape(bblk, seq, embed)
    vb = v.astype(jnp.bfloat16).reshape(bblk, seq, embed)

    # ---- attention: softmax(q @ k^T) @ v per head, batched over the batch block.
    #      NO 1/sqrt(d) scaling (matches the reference).  Head outputs are
    #      accumulated into a pre-allocated VMEM scratch that already holds the
    #      residual, so there is no concatenate and no pile of live per-head temps.
    attn_ref[...] = x3                            # residual 1 pre-loaded
    for hh in range(heads):                       # static loop, small H
        lo = hh * dh
        qh = qb[:, :, lo:lo + dh]
        kh = kb[:, :, lo:lo + dh]
        vh = vb[:, :, lo:lo + dh]
        s = jnp.einsum('bqd,bkd->bqk', qh, kh,
                       preferred_element_type=jnp.float32)        # (bblk, S, S)
        s = s - jnp.max(s, axis=-1, keepdims=True)
        p = jnp.exp(s)
        p = p * pl.reciprocal(jnp.sum(p, axis=-1, keepdims=True), approx=True)
        # dropout(p) == identity in eval mode
        oh = jnp.einsum('bqk,bkd->bqd', p.astype(jnp.bfloat16), vh,
                        preferred_element_type=jnp.float32)       # (bblk, S, dh)
        attn_ref[:, :, lo:lo + dh] += oh

    out1 = attn_ref[...].reshape(rows, embed)     # attention + residual 1

    # ---- norm2 + feed-forward (bf16 matmuls, f32 epilogue) ----
    h2 = _layer_norm(out1, g2_ref[0], be2_ref[0]).astype(jnp.bfloat16)
    ff1 = jnp.dot(h2, w1_ref[0], preferred_element_type=jnp.float32) + b1_ref[0]
    gelu = 0.5 * ff1 * (1.0 + jax.lax.erf(ff1 * (1.0 / math.sqrt(2.0))))
    # dropout(gelu) == identity in eval mode
    ff2 = jnp.dot(gelu.astype(jnp.bfloat16), w2_ref[0],
                  preferred_element_type=jnp.float32) + b2_ref[0]
    y = (ff2 + out1).reshape(bblk, seq, embed)    # residual 2

    act_ref[...] = y                              # stays resident for next layer

    @pl.when(layer == n_layers - 1)
    def _():
        o_ref[...] = y


def _pick_batch_block(batch, seq, target_rows=256):
    """Pick a batch block size: ~target_rows rows per step, but keep >=2 blocks
    on the parallel grid axis when possible (megacore / v7x two TensorCores)."""
    bblk = max(1, min(batch, target_rows // max(seq, 1)))
    while bblk > 1 and batch // bblk < 2:
        bblk -= 1
    while batch % bblk:
        bblk -= 1
    return bblk


def transformer_forward(x, params, heads):
    """x: (B, S, E) float32.  params: dict of per-layer-stacked arrays."""
    B, S, E = x.shape
    L = params["wq"].shape[0]
    Eh = params["w1"].shape[-1]
    assert E % heads == 0

    bblk = _pick_batch_block(B, S)
    grid = (B // bblk, L)

    lspec = lambda shape: pl.BlockSpec((1,) + shape, lambda b, l: (l, 0, 0))
    kernel = functools.partial(transformer_kernel, heads=heads)

    return pl.pallas_call(
        kernel,
        out_shape=jax.ShapeDtypeStruct((B, S, E), jnp.float32),
        grid_spec=pltpu.PrefetchScalarGridSpec(
            num_scalar_prefetch=0,
            grid=grid,
            in_specs=[
                pl.BlockSpec((bblk, S, E), lambda b, l: (b, 0, 0)),  # x
                lspec((E, E)), lspec((1, E)),     # wq, bq
                lspec((E, E)), lspec((1, E)),     # wk, bk
                lspec((E, E)), lspec((1, E)),     # wv, bv
                lspec((1, E)), lspec((1, E)),     # ln1 gamma, beta
                lspec((1, E)), lspec((1, E)),     # ln2 gamma, beta
                lspec((E, Eh)), lspec((1, Eh)),   # w1, b1
                lspec((Eh, E)), lspec((1, E)),    # w2, b2
            ],
            out_specs=pl.BlockSpec((bblk, S, E), lambda b, l: (b, 0, 0)),
            scratch_shapes=[
                pltpu.VMEM((bblk, S, E), jnp.float32),   # resident activation
                pltpu.VMEM((bblk, S, E), jnp.float32),   # attention accumulator
            ],
        ),
        compiler_params=pltpu.CompilerParams(
            dimension_semantics=("parallel", "arbitrary"),
            vmem_limit_bytes=48 * 1024 * 1024,
        ),
    )(
        x,
        params["wq"], params["bq"], params["wk"], params["bk"],
        params["wv"], params["bv"],
        params["g1"], params["be1"], params["g2"], params["be2"],
        params["w1"], params["b1"], params["w2"], params["b2"],
    )


def init_params(key, embed_dim, layers, forward_expansion=1,
                matmul_dtype=jnp.bfloat16):
    """Deterministic synthetic parameters, stacked along a leading layer axis.

    Linear weights use (in, out) layout so the kernel computes y = x @ W + b
    (a real port would transpose torch's (out, in) Linear weights) and are
    stored in bf16 for the MXU; biases / LayerNorm params stay f32."""
    hidden = embed_dim * forward_expansion
    ks = jax.random.split(key, 10)

    def lin(kw, kb, fan_in, fan_out):
        w = jax.random.normal(kw, (layers, fan_in, fan_out), jnp.float32) * 0.05
        b = jax.random.normal(kb, (layers, 1, fan_out), jnp.float32) * 0.05
        return w.astype(matmul_dtype), b

    wq, bq = lin(ks[0], ks[1], embed_dim, embed_dim)
    wk, bk = lin(ks[2], ks[3], embed_dim, embed_dim)
    wv, bv = lin(ks[4], ks[5], embed_dim, embed_dim)
    w1, b1 = lin(ks[6], ks[7], embed_dim, hidden)
    w2, b2 = lin(ks[8], ks[9], hidden, embed_dim)
    ones = jnp.ones((layers, 1, embed_dim), jnp.float32)
    zeros = jnp.zeros((layers, 1, embed_dim), jnp.float32)
    return dict(wq=wq, bq=bq, wk=wk, bk=bk, wv=wv, bv=bv,
                g1=ones, be1=zeros, g2=ones, be2=zeros,
                w1=w1, b1=b1, w2=w2, b2=b2)


if __name__ == "__main__":
    # Small shapes consistent with the module's forward: (batch, seq, embed)
    batch, seq, embed_dim, heads, layers = 2, 8, 32, 4, 2
    key = jax.random.PRNGKey(0)
    x = jax.random.normal(jax.random.fold_in(key, 1234),
                          (batch, seq, embed_dim), jnp.float32)
    params = init_params(key, embed_dim, layers, forward_expansion=1)

    # TODO(synk): dropout layers are treated as identity (inference semantics);
    # training-mode dropout masks are not reproduced.
    out = transformer_forward(x, params, heads)
    jax.block_until_ready(out)
    assert out.shape == (batch, seq, embed_dim)
    print("KERNEL_OK")
</pallas_src>

<mosaic_0001>
module attributes {stable_mosaic.version = 11 : i64} {
  func.func @transformer_kernel(%arg0: i32, %arg1: i32, %arg2: memref<1x8x32xf32, #tpu.memory_space<vmem>>, %arg3: memref<1x32x32xbf16, #tpu.memory_space<vmem>>, %arg4: memref<1x1x32xf32, #tpu.memory_space<vmem>>, %arg5: memref<1x32x32xbf16, #tpu.memory_space<vmem>>, %arg6: memref<1x1x32xf32, #tpu.memory_space<vmem>>, %arg7: memref<1x32x32xbf16, #tpu.memory_space<vmem>>, %arg8: memref<1x1x32xf32, #tpu.memory_space<vmem>>, %arg9: memref<1x1x32xf32, #tpu.memory_space<vmem>>, %arg10: memref<1x1x32xf32, #tpu.memory_space<vmem>>, %arg11: memref<1x1x32xf32, #tpu.memory_space<vmem>>, %arg12: memref<1x1x32xf32, #tpu.memory_space<vmem>>, %arg13: memref<1x32x32xbf16, #tpu.memory_space<vmem>>, %arg14: memref<1x1x32xf32, #tpu.memory_space<vmem>>, %arg15: memref<1x32x32xbf16, #tpu.memory_space<vmem>>, %arg16: memref<1x1x32xf32, #tpu.memory_space<vmem>>, %arg17: memref<1x8x32xf32, #tpu.memory_space<vmem>>, %arg18: memref<1x8x32xf32, #tpu.memory_space<vmem>>, %arg19: memref<1x8x32xf32, #tpu.memory_space<vmem>>) attributes {dimension_semantics = [#tpu.dimension_semantics<parallel>, #tpu.dimension_semantics<arbitrary>], iteration_bounds = array<i64: 2, 2>, scalar_prefetch = 0 : i64, scratch_operands = 2 : i64, tpu.core_type = #tpu.core_type<tc>, window_params = [{transform_indices = @transform_0, window_bounds = array<i64: 1, 8, 32>}, {transform_indices = @transform_1, window_bounds = array<i64: 1, 32, 32>}, {transform_indices = @transform_2, window_bounds = array<i64: 1, 1, 32>}, {transform_indices = @transform_3, window_bounds = array<i64: 1, 32, 32>}, {transform_indices = @transform_4, window_bounds = array<i64: 1, 1, 32>}, {transform_indices = @transform_5, window_bounds = array<i64: 1, 32, 32>}, {transform_indices = @transform_6, window_bounds = array<i64: 1, 1, 32>}, {transform_indices = @transform_7, window_bounds = array<i64: 1, 1, 32>}, {transform_indices = @transform_8, window_bounds = array<i64: 1, 1, 32>}, {transform_indices = @transform_9, window_bounds = array<i64: 1, 1, 32>}, {transform_indices = @transform_10, window_bounds = array<i64: 1, 1, 32>}, {transform_indices = @transform_11, window_bounds = array<i64: 1, 32, 32>}, {transform_indices = @transform_12, window_bounds = array<i64: 1, 1, 32>}, {transform_indices = @transform_13, window_bounds = array<i64: 1, 32, 32>}, {transform_indices = @transform_14, window_bounds = array<i64: 1, 1, 32>}, {transform_indices = @transform_15, window_bounds = array<i64: 1, 8, 32>}]} {
    %c0_i32 = arith.constant 0 : i32
    %0 = arith.cmpi eq, %arg1, %c0_i32 : i32
    %1 = arith.extui %0 : i1 to i32
    %c0_i32_0 = arith.constant 0 : i32
    %2 = arith.cmpi ne, %1, %c0_i32_0 : i32
    scf.if %2 {
      %c0_109 = arith.constant 0 : index
      %c0_110 = arith.constant 0 : index
      %c0_111 = arith.constant 0 : index
      %194 = vector.load %arg2[%c0_109, %c0_110, %c0_111] : memref<1x8x32xf32, #tpu.memory_space<vmem>>, vector<1x8x32xf32>
      %c0_112 = arith.constant 0 : index
      %c0_113 = arith.constant 0 : index
      %c0_114 = arith.constant 0 : index
      %195 = vector.load %arg18[%c0_112, %c0_113, %c0_114] : memref<1x8x32xf32, #tpu.memory_space<vmem>>, vector<1x8x32xf32>
      tpu.vector_store %arg18[%c0_112, %c0_113, %c0_114], %194 {strides = array<i32>} : memref<1x8x32xf32, #tpu.memory_space<vmem>>, vector<1x8x32xf32>,
    } else {
    }
    %c0 = arith.constant 0 : index
    %c0_1 = arith.constant 0 : index
    %c0_2 = arith.constant 0 : index
    %3 = vector.load %arg18[%c0, %c0_1, %c0_2] : memref<1x8x32xf32, #tpu.memory_space<vmem>>, vector<1x8x32xf32>
    %4 = vector.shape_cast %3 : vector<1x8x32xf32> to vector<8x32xf32>
    %c0_3 = arith.constant 0 : index
    %c0_4 = arith.constant 0 : index
    %c0_5 = arith.constant 0 : index
    %5 = vector.load %arg9[%c0_3, %c0_4, %c0_5] : memref<1x1x32xf32, #tpu.memory_space<vmem>>, vector<1x1x32xf32>
    %6 = vector.shape_cast %5 : vector<1x1x32xf32> to vector<1x32xf32>
    %c0_6 = arith.constant 0 : index
    %c0_7 = arith.constant 0 : index
    %c0_8 = arith.constant 0 : index
    %7 = vector.load %arg10[%c0_6, %c0_7, %c0_8] : memref<1x1x32xf32, #tpu.memory_space<vmem>>, vector<1x1x32xf32>
    %8 = vector.shape_cast %7 : vector<1x1x32xf32> to vector<1x32xf32>
    %cst = arith.constant dense<0.000000e+00> : vector<8xf32>
    %9 = vector.multi_reduction <add>, %4, %cst [1] : vector<8x32xf32> to vector<8xf32>
    %10 = vector.shape_cast %9 : vector<8xf32> to vector<8x1xf32>
    %cst_9 = arith.constant 3.200000e+01 : f32
    %11 = vector.broadcast %cst_9 : f32 to vector<8x1xf32>
    %12 = arith.divf %10, %11 : vector<8x1xf32>
    %13 = vector.broadcast %12 : vector<8x1xf32> to vector<8x32xf32>
    %14 = arith.subf %4, %13 : vector<8x32xf32>
    %15 = arith.mulf %14, %14 : vector<8x32xf32>
    %cst_10 = arith.constant dense<0.000000e+00> : vector<8xf32>
    %16 = vector.multi_reduction <add>, %15, %cst_10 [1] : vector<8x32xf32> to vector<8xf32>
    %17 = vector.shape_cast %16 : vector<8xf32> to vector<8x1xf32>
    %cst_11 = arith.constant 3.200000e+01 : f32
    %18 = vector.broadcast %cst_11 : f32 to vector<8x1xf32>
    %19 = arith.divf %17, %18 : vector<8x1xf32>
    %20 = vector.broadcast %12 : vector<8x1xf32> to vector<8x32xf32>
    %21 = arith.subf %4, %20 : vector<8x32xf32>
    %cst_12 = arith.constant 9.99999974E-6 : f32
    %22 = vector.broadcast %cst_12 : f32 to vector<8x1xf32>
    %23 = arith.addf %19, %22 : vector<8x1xf32>
    %24 = math.rsqrt %23 : vector<8x1xf32>
    %25 = vector.broadcast %24 : vector<8x1xf32> to vector<8x32xf32>
    %26 = arith.mulf %21, %25 : vector<8x32xf32>
    %27 = vector.broadcast %6 : vector<1x32xf32> to vector<8x32xf32>
    %28 = arith.mulf %26, %27 : vector<8x32xf32>
    %29 = vector.broadcast %8 : vector<1x32xf32> to vector<8x32xf32>
    %30 = arith.addf %28, %29 : vector<8x32xf32>
    %31 = arith.truncf %30 : vector<8x32xf32> to vector<8x32xbf16>
    %c0_13 = arith.constant 0 : index
    %c0_14 = arith.constant 0 : index
    %c0_15 = arith.constant 0 : index
    %32 = vector.load %arg3[%c0_13, %c0_14, %c0_15] : memref<1x32x32xbf16, #tpu.memory_space<vmem>>, vector<1x32x32xbf16>
    %33 = vector.shape_cast %32 : vector<1x32x32xbf16> to vector<32x32xbf16>
    %cst_16 = arith.constant dense<0.000000e+00> : vector<8x32xf32>
    %34 = tpu.matmul %31, %33, %cst_16 {dimension_numbers = #tpu.dot_dimension_numbers<[1], [0], [0], [1], [0, 0, 1, 1], [], []>} : vector<8x32xbf16>, vector<32x32xbf16>, vector<8x32xf32> -> vector<8x32xf32>
    %c0_17 = arith.constant 0 : index
    %c0_18 = arith.constant 0 : index
    %c0_19 = arith.constant 0 : index
    %35 = vector.load %arg4[%c0_17, %c0_18, %c0_19] : memref<1x1x32xf32, #tpu.memory_space<vmem>>, vector<1x1x32xf32>
    %36 = vector.shape_cast %35 : vector<1x1x32xf32> to vector<1x32xf32>
    %37 = vector.broadcast %36 : vector<1x32xf32> to vector<8x32xf32>
    %38 = arith.addf %34, %37 : vector<8x32xf32>
    %c0_20 = arith.constant 0 : index
    %c0_21 = arith.constant 0 : index
    %c0_22 = arith.constant 0 : index
    %39 = vector.load %arg5[%c0_20, %c0_21, %c0_22] : memref<1x32x32xbf16, #tpu.memory_space<vmem>>, vector<1x32x32xbf16>
    %40 = vector.shape_cast %39 : vector<1x32x32xbf16> to vector<32x32xbf16>
    %cst_23 = arith.constant dense<0.000000e+00> : vector<8x32xf32>
    %41 = tpu.matmul %31, %40, %cst_23 {dimension_numbers = #tpu.dot_dimension_numbers<[1], [0], [0], [1], [0, 0, 1, 1], [], []>} : vector<8x32xbf16>, vector<32x32xbf16>, vector<8x32xf32> -> vector<8x32xf32>
    %c0_24 = arith.constant 0 : index
    %c0_25 = arith.constant 0 : index
    %c0_26 = arith.constant 0 : index
    %42 = vector.load %arg6[%c0_24, %c0_25, %c0_26] : memref<1x1x32xf32, #tpu.memory_space<vmem>>, vector<1x1x32xf32>
    %43 = vector.shape_cast %42 : vector<1x1x32xf32> to vector<1x32xf32>
    %44 = vector.broadcast %43 : vector<1x32xf32> to vector<8x32xf32>
    %45 = arith.addf %41, %44 : vector<8x32xf32>
    %c0_27 = arith.constant 0 : index
    %c0_28 = arith.constant 0 : index
    %c0_29 = arith.constant 0 : index
    %46 = vector.load %arg7[%c0_27, %c0_28, %c0_29] : memref<1x32x32xbf16, #tpu.memory_space<vmem>>, vector<1x32x32xbf16>
    %47 = vector.shape_cast %46 : vector<1x32x32xbf16> to vector<32x32xbf16>
    %cst_30 = arith.constant dense<0.000000e+00> : vector<8x32xf32>
    %48 = tpu.matmul %31, %47, %cst_30 {dimension_numbers = #tpu.dot_dimension_numbers<[1], [0], [0], [1], [0, 0, 1, 1], [], []>} : vector<8x32xbf16>, vector<32x32xbf16>, vector<8x32xf32> -> vector<8x32xf32>
    %c0_31 = arith.constant 0 : index
    %c0_32 = arith.constant 0 : index
    %c0_33 = arith.constant 0 : index
    %49 = vector.load %arg8[%c0_31, %c0_32, %c0_33] : memref<1x1x32xf32, #tpu.memory_space<vmem>>, vector<1x1x32xf32>
    %50 = vector.shape_cast %49 : vector<1x1x32xf32> to vector<1x32xf32>
    %51 = vector.broadcast %50 : vector<1x32xf32> to vector<8x32xf32>
    %52 = arith.addf %48, %51 : vector<8x32xf32>
    %53 = arith.truncf %38 : vector<8x32xf32> to vector<8x32xbf16>
    %54 = vector.shape_cast %53 : vector<8x32xbf16> to vector<1x8x32xbf16>
    %55 = arith.truncf %45 : vector<8x32xf32> to vector<8x32xbf16>
    %56 = vector.shape_cast %55 : vector<8x32xbf16> to vector<1x8x32xbf16>
    %57 = arith.truncf %52 : vector<8x32xf32> to vector<8x32xbf16>
    %58 = vector.shape_cast %57 : vector<8x32xbf16> to vector<1x8x32xbf16>
    %c0_34 = arith.constant 0 : index
    %c0_35 = arith.constant 0 : index
    %c0_36 = arith.constant 0 : index
    %59 = vector.load %arg19[%c0_34, %c0_35, %c0_36] : memref<1x8x32xf32, #tpu.memory_space<vmem>>, vector<1x8x32xf32>
    tpu.vector_store %arg19[%c0_34, %c0_35, %c0_36], %3 {strides = array<i32>} : memref<1x8x32xf32, #tpu.memory_space<vmem>>, vector<1x8x32xf32>,
    %60 = vector.extract_strided_slice %54 {offsets = [0, 0, 0], sizes = [1, 8, 8], strides = [1, 1, 1]} : vector<1x8x32xbf16> to vector<1x8x8xbf16>
    %61 = vector.extract_strided_slice %56 {offsets = [0, 0, 0], sizes = [1, 8, 8], strides = [1, 1, 1]} : vector<1x8x32xbf16> to vector<1x8x8xbf16>
    %62 = vector.extract_strided_slice %58 {offsets = [0, 0, 0], sizes = [1, 8, 8], strides = [1, 1, 1]} : vector<1x8x32xbf16> to vector<1x8x8xbf16>
    "tpu.trace_start"() <{level = 10 : i32, message = "bqd,bkd->bqk"}> : () -> ()
    %cst_37 = arith.constant dense<0.000000e+00> : vector<1x8x8xf32>
    %63 = tpu.matmul %60, %61, %cst_37 {dimension_numbers = #tpu.dot_dimension_numbers<[2], [2], [1], [1], [0, 0, 0, 1, 1, 1], [0], [0]>} : vector<1x8x8xbf16>, vector<1x8x8xbf16>, vector<1x8x8xf32> -> vector<1x8x8xf32>
    "tpu.trace_stop"() : () -> ()
    %cst_38 = arith.constant dense<0xFF800000> : vector<1x8xf32>
    %64 = vector.multi_reduction <maximumf>, %63, %cst_38 [2] : vector<1x8x8xf32> to vector<1x8xf32>
    %65 = vector.shape_cast %64 : vector<1x8xf32> to vector<1x8x1xf32>
    %66 = vector.broadcast %65 : vector<1x8x1xf32> to vector<1x8x8xf32>
    %67 = arith.subf %63, %66 : vector<1x8x8xf32>
    %68 = math.exp %67 : vector<1x8x8xf32>
    %cst_39 = arith.constant dense<0.000000e+00> : vector<1x8xf32>
    %69 = vector.multi_reduction <add>, %68, %cst_39 [2] : vector<1x8x8xf32> to vector<1x8xf32>
    %70 = vector.shape_cast %69 : vector<1x8xf32> to vector<1x8x1xf32>
    %71 = tpu.reciprocal %70 {approx = true} : vector<1x8x1xf32> -> vector<1x8x1xf32>
    %72 = vector.broadcast %71 : vector<1x8x1xf32> to vector<1x8x8xf32>
    %73 = arith.mulf %68, %72 : vector<1x8x8xf32>
    %74 = arith.truncf %73 : vector<1x8x8xf32> to vector<1x8x8xbf16>
    "tpu.trace_start"() <{level = 10 : i32, message = "bqk,bkd->bqd"}> : () -> ()
    %cst_40 = arith.constant dense<0.000000e+00> : vector<1x8x8xf32>
    %75 = tpu.matmul %74, %62, %cst_40 {dimension_numbers = #tpu.dot_dimension_numbers<[2], [1], [1], [2], [0, 0, 0, 1, 1, 2], [0], [0]>} : vector<1x8x8xbf16>, vector<1x8x8xbf16>, vector<1x8x8xf32> -> vector<1x8x8xf32>
    "tpu.trace_stop"() : () -> ()
    %c0_41 = arith.constant 0 : index
    %c0_42 = arith.constant 0 : index
    %c0_43 = arith.constant 0 : index
    %76 = vector.load %arg19[%c0_41, %c0_42, %c0_43] : memref<1x8x32xf32, #tpu.memory_space<vmem>>, vector<1x8x8xf32>
    %77 = arith.addf %76, %75 : vector<1x8x8xf32>
    %c0_44 = arith.constant 0 : index
    %c0_45 = arith.constant 0 : index
    %c0_46 = arith.constant 0 : index
    %78 = vector.load %arg19[%c0_44, %c0_45, %c0_46] : memref<1x8x32xf32, #tpu.memory_space<vmem>>, vector<1x8x8xf32>
    tpu.vector_store %arg19[%c0_44, %c0_45, %c0_46], %77 {strides = array<i32>} : memref<1x8x32xf32, #tpu.memory_space<vmem>>, vector<1x8x8xf32>,
    %79 = vector.extract_strided_slice %54 {offsets = [0, 0, 8], sizes = [1, 8, 8], strides = [1, 1, 1]} : vector<1x8x32xbf16> to vector<1x8x8xbf16>
    %80 = vector.extract_strided_slice %56 {offsets = [0, 0, 8], sizes = [1, 8, 8], strides = [1, 1, 1]} : vector<1x8x32xbf16> to vector<1x8x8xbf16>
    %81 = vector.extract_strided_slice %58 {offsets = [0, 0, 8], sizes = [1, 8, 8], strides = [1, 1, 1]} : vector<1x8x32xbf16> to vector<1x8x8xbf16>
    "tpu.trace_start"() <{level = 10 : i32, message = "bqd,bkd->bqk"}> : () -> ()
    %cst_47 = arith.constant dense<0.000000e+00> : vector<1x8x8xf32>
    %82 = tpu.matmul %79, %80, %cst_47 {dimension_numbers = #tpu.dot_dimension_numbers<[2], [2], [1], [1], [0, 0, 0, 1, 1, 1], [0], [0]>} : vector<1x8x8xbf16>, vector<1x8x8xbf16>, vector<1x8x8xf32> -> vector<1x8x8xf32>
    "tpu.trace_stop"() : () -> ()
    %cst_48 = arith.constant dense<0xFF800000> : vector<1x8xf32>
    %83 = vector.multi_reduction <maximumf>, %82, %cst_48 [2] : vector<1x8x8xf32> to vector<1x8xf32>
    %84 = vector.shape_cast %83 : vector<1x8xf32> to vector<1x8x1xf32>
    %85 = vector.broadcast %84 : vector<1x8x1xf32> to vector<1x8x8xf32>
    %86 = arith.subf %82, %85 : vector<1x8x8xf32>
    %87 = math.exp %86 : vector<1x8x8xf32>
    %cst_49 = arith.constant dense<0.000000e+00> : vector<1x8xf32>
    %88 = vector.multi_reduction <add>, %87, %cst_49 [2] : vector<1x8x8xf32> to vector<1x8xf32>
    %89 = vector.shape_cast %88 : vector<1x8xf32> to vector<1x8x1xf32>
    %90 = tpu.reciprocal %89 {approx = true} : vector<1x8x1xf32> -> vector<1x8x1xf32>
    %91 = vector.broadcast %90 : vector<1x8x1xf32> to vector<1x8x8xf32>
    %92 = arith.mulf %87, %91 : vector<1x8x8xf32>
    %93 = arith.truncf %92 : vector<1x8x8xf32> to vector<1x8x8xbf16>
    "tpu.trace_start"() <{level = 10 : i32, message = "bqk,bkd->bqd"}> : () -> ()
    %cst_50 = arith.constant dense<0.000000e+00> : vector<1x8x8xf32>
    %94 = tpu.matmul %93, %81, %cst_50 {dimension_numbers = #tpu.dot_dimension_numbers<[2], [1], [1], [2], [0, 0, 0, 1, 1, 2], [0], [0]>} : vector<1x8x8xbf16>, vector<1x8x8xbf16>, vector<1x8x8xf32> -> vector<1x8x8xf32>
    "tpu.trace_stop"() : () -> ()
    %c0_51 = arith.constant 0 : index
    %c0_52 = arith.constant 0 : index
    %c8 = arith.constant 8 : index
    %95 = vector.load %arg19[%c0_51, %c0_52, %c8] : memref<1x8x32xf32, #tpu.memory_space<vmem>>, vector<1x8x8xf32>
    %96 = arith.addf %95, %94 : vector<1x8x8xf32>
    %c0_53 = arith.constant 0 : index
    %c0_54 = arith.constant 0 : index
    %c8_55 = arith.constant 8 : index
    %97 = vector.load %arg19[%c0_53, %c0_54, %c8_55] : memref<1x8x32xf32, #tpu.memory_space<vmem>>, vector<1x8x8xf32>
    tpu.vector_store %arg19[%c0_53, %c0_54, %c8_55], %96 {strides = array<i32>} : memref<1x8x32xf32, #tpu.memory_space<vmem>>, vector<1x8x8xf32>,
    %98 = vector.extract_strided_slice %54 {offsets = [0, 0, 16], sizes = [1, 8, 8], strides = [1, 1, 1]} : vector<1x8x32xbf16> to vector<1x8x8xbf16>
    %99 = vector.extract_strided_slice %56 {offsets = [0, 0, 16], sizes = [1, 8, 8], strides = [1, 1, 1]} : vector<1x8x32xbf16> to vector<1x8x8xbf16>
    %100 = vector.extract_strided_slice %58 {offsets = [0, 0, 16], sizes = [1, 8, 8], strides = [1, 1, 1]} : vector<1x8x32xbf16> to vector<1x8x8xbf16>
    "tpu.trace_start"() <{level = 10 : i32, message = "bqd,bkd->bqk"}> : () -> ()
    %cst_56 = arith.constant dense<0.000000e+00> : vector<1x8x8xf32>
    %101 = tpu.matmul %98, %99, %cst_56 {dimension_numbers = #tpu.dot_dimension_numbers<[2], [2], [1], [1], [0, 0, 0, 1, 1, 1], [0], [0]>} : vector<1x8x8xbf16>, vector<1x8x8xbf16>, vector<1x8x8xf32> -> vector<1x8x8xf32>
    "tpu.trace_stop"() : () -> ()
    %cst_57 = arith.constant dense<0xFF800000> : vector<1x8xf32>
    %102 = vector.multi_reduction <maximumf>, %101, %cst_57 [2] : vector<1x8x8xf32> to vector<1x8xf32>
    %103 = vector.shape_cast %102 : vector<1x8xf32> to vector<1x8x1xf32>
    %104 = vector.broadcast %103 : vector<1x8x1xf32> to vector<1x8x8xf32>
    %105 = arith.subf %101, %104 : vector<1x8x8xf32>
    %106 = math.exp %105 : vector<1x8x8xf32>
    %cst_58 = arith.constant dense<0.000000e+00> : vector<1x8xf32>
    %107 = vector.multi_reduction <add>, %106, %cst_58 [2] : vector<1x8x8xf32> to vector<1x8xf32>
    %108 = vector.shape_cast %107 : vector<1x8xf32> to vector<1x8x1xf32>
    %109 = tpu.reciprocal %108 {approx = true} : vector<1x8x1xf32> -> vector<1x8x1xf32>
    %110 = vector.broadcast %109 : vector<1x8x1xf32> to vector<1x8x8xf32>
    %111 = arith.mulf %106, %110 : vector<1x8x8xf32>
    %112 = arith.truncf %111 : vector<1x8x8xf32> to vector<1x8x8xbf16>
    "tpu.trace_start"() <{level = 10 : i32, message = "bqk,bkd->bqd"}> : () -> ()
    %cst_59 = arith.constant dense<0.000000e+00> : vector<1x8x8xf32>
    %113 = tpu.matmul %112, %100, %cst_59 {dimension_numbers = #tpu.dot_dimension_numbers<[2], [1], [1], [2], [0, 0, 0, 1, 1, 2], [0], [0]>} : vector<1x8x8xbf16>, vector<1x8x8xbf16>, vector<1x8x8xf32> -> vector<1x8x8xf32>
    "tpu.trace_stop"() : () -> ()
    %c0_60 = arith.constant 0 : index
    %c0_61 = arith.constant 0 : index
    %c16 = arith.constant 16 : index
    %114 = vector.load %arg19[%c0_60, %c0_61, %c16] : memref<1x8x32xf32, #tpu.memory_space<vmem>>, vector<1x8x8xf32>
    %115 = arith.addf %114, %113 : vector<1x8x8xf32>
    %c0_62 = arith.constant 0 : index
    %c0_63 = arith.constant 0 : index
    %c16_64 = arith.constant 16 : index
    %116 = vector.load %arg19[%c0_62, %c0_63, %c16_64] : memref<1x8x32xf32, #tpu.memory_space<vmem>>, vector<1x8x8xf32>
    tpu.vector_store %arg19[%c0_62, %c0_63, %c16_64], %115 {strides = array<i32>} : memref<1x8x32xf32, #tpu.memory_space<vmem>>, vector<1x8x8xf32>,
    %117 = vector.extract_strided_slice %54 {offsets = [0, 0, 24], sizes = [1, 8, 8], strides = [1, 1, 1]} : vector<1x8x32xbf16> to vector<1x8x8xbf16>
    %118 = vector.extract_strided_slice %56 {offsets = [0, 0, 24], sizes = [1, 8, 8], strides = [1, 1, 1]} : vector<1x8x32xbf16> to vector<1x8x8xbf16>
    %119 = vector.extract_strided_slice %58 {offsets = [0, 0, 24], sizes = [1, 8, 8], strides = [1, 1, 1]} : vector<1x8x32xbf16> to vector<1x8x8xbf16>
    "tpu.trace_start"() <{level = 10 : i32, message = "bqd,bkd->bqk"}> : () -> ()
    %cst_65 = arith.constant dense<0.000000e+00> : vector<1x8x8xf32>
    %120 = tpu.matmul %117, %118, %cst_65 {dimension_numbers = #tpu.dot_dimension_numbers<[2], [2], [1], [1], [0, 0, 0, 1, 1, 1], [0], [0]>} : vector<1x8x8xbf16>, vector<1x8x8xbf16>, vector<1x8x8xf32> -> vector<1x8x8xf32>
    "tpu.trace_stop"() : () -> ()
    %cst_66 = arith.constant dense<0xFF800000> : vector<1x8xf32>
    %121 = vector.multi_reduction <maximumf>, %120, %cst_66 [2] : vector<1x8x8xf32> to vector<1x8xf32>
    %122 = vector.shape_cast %121 : vector<1x8xf32> to vector<1x8x1xf32>
    %123 = vector.broadcast %122 : vector<1x8x1xf32> to vector<1x8x8xf32>
    %124 = arith.subf %120, %123 : vector<1x8x8xf32>
    %125 = math.exp %124 : vector<1x8x8xf32>
    %cst_67 = arith.constant dense<0.000000e+00> : vector<1x8xf32>
    %126 = vector.multi_reduction <add>, %125, %cst_67 [2] : vector<1x8x8xf32> to vector<1x8xf32>
    %127 = vector.shape_cast %126 : vector<1x8xf32> to vector<1x8x1xf32>
    %128 = tpu.reciprocal %127 {approx = true} : vector<1x8x1xf32> -> vector<1x8x1xf32>
    %129 = vector.broadcast %128 : vector<1x8x1xf32> to vector<1x8x8xf32>
    %130 = arith.mulf %125, %129 : vector<1x8x8xf32>
    %131 = arith.truncf %130 : vector<1x8x8xf32> to vector<1x8x8xbf16>
    "tpu.trace_start"() <{level = 10 : i32, message = "bqk,bkd->bqd"}> : () -> ()
    %cst_68 = arith.constant dense<0.000000e+00> : vector<1x8x8xf32>
    %132 = tpu.matmul %131, %119, %cst_68 {dimension_numbers = #tpu.dot_dimension_numbers<[2], [1], [1], [2], [0, 0, 0, 1, 1, 2], [0], [0]>} : vector<1x8x8xbf16>, vector<1x8x8xbf16>, vector<1x8x8xf32> -> vector<1x8x8xf32>
    "tpu.trace_stop"() : () -> ()
    %c0_69 = arith.constant 0 : index
    %c0_70 = arith.constant 0 : index
    %c24 = arith.constant 24 : index
    %133 = vector.load %arg19[%c0_69, %c0_70, %c24] : memref<1x8x32xf32, #tpu.memory_space<vmem>>, vector<1x8x8xf32>
    %134 = arith.addf %133, %132 : vector<1x8x8xf32>
    %c0_71 = arith.constant 0 : index
    %c0_72 = arith.constant 0 : index
    %c24_73 = arith.constant 24 : index
    %135 = vector.load %arg19[%c0_71, %c0_72, %c24_73] : memref<1x8x32xf32, #tpu.memory_space<vmem>>, vector<1x8x8xf32>
    tpu.vector_store %arg19[%c0_71, %c0_72, %c24_73], %134 {strides = array<i32>} : memref<1x8x32xf32, #tpu.memory_space<vmem>>, vector<1x8x8xf32>,
    %c0_74 = arith.constant 0 : index
    %c0_75 = arith.constant 0 : index
    %c0_76 = arith.constant 0 : index
    %136 = vector.load %arg19[%c0_74, %c0_75, %c0_76] : memref<1x8x32xf32, #tpu.memory_space<vmem>>, vector<1x8x32xf32>
    %137 = vector.shape_cast %136 : vector<1x8x32xf32> to vector<8x32xf32>
    %c0_77 = arith.constant 0 : index
    %c0_78 = arith.constant 0 : index
    %c0_79 = arith.constant 0 : index
    %138 = vector.load %arg11[%c0_77, %c0_78, %c0_79] : memref<1x1x32xf32, #tpu.memory_space<vmem>>, vector<1x1x32xf32>
    %139 = vector.shape_cast %138 : vector<1x1x32xf32> to vector<1x32xf32>
    %c0_80 = arith.constant 0 : index
    %c0_81 = arith.constant 0 : index
    %c0_82 = arith.constant 0 : index
    %140 = vector.load %arg12[%c0_80, %c0_81, %c0_82] : memref<1x1x32xf32, #tpu.memory_space<vmem>>, vector<1x1x32xf32>
    %141 = vector.shape_cast %140 : vector<1x1x32xf32> to vector<1x32xf32>
    %cst_83 = arith.constant dense<0.000000e+00> : vector<8xf32>
    %142 = vector.multi_reduction <add>, %137, %cst_83 [1] : vector<8x32xf32> to vector<8xf32>
    %143 = vector.shape_cast %142 : vector<8xf32> to vector<8x1xf32>
    %cst_84 = arith.constant 3.200000e+01 : f32
    %144 = vector.broadcast %cst_84 : f32 to vector<8x1xf32>
    %145 = arith.divf %143, %144 : vector<8x1xf32>
    %146 = vector.broadcast %145 : vector<8x1xf32> to vector<8x32xf32>
    %147 = arith.subf %137, %146 : vector<8x32xf32>
    %148 = arith.mulf %147, %147 : vector<8x32xf32>
    %cst_85 = arith.constant dense<0.000000e+00> : vector<8xf32>
    %149 = vector.multi_reduction <add>, %148, %cst_85 [1] : vector<8x32xf32> to vector<8xf32>
    %150 = vector.shape_cast %149 : vector<8xf32> to vector<8x1xf32>
    %cst_86 = arith.constant 3.200000e+01 : f32
    %151 = vector.broadcast %cst_86 : f32 to vector<8x1xf32>
    %152 = arith.divf %150, %151 : vector<8x1xf32>
    %153 = vector.broadcast %145 : vector<8x1xf32> to vector<8x32xf32>
    %154 = arith.subf %137, %153 : vector<8x32xf32>
    %cst_87 = arith.constant 9.99999974E-6 : f32
    %155 = vector.broadcast %cst_87 : f32 to vector<8x1xf32>
    %156 = arith.addf %152, %155 : vector<8x1xf32>
    %157 = math.rsqrt %156 : vector<8x1xf32>
    %158 = vector.broadcast %157 : vector<8x1xf32> to vector<8x32xf32>
    %159 = arith.mulf %154, %158 : vector<8x32xf32>
    %160 = vector.broadcast %139 : vector<1x32xf32> to vector<8x32xf32>
    %161 = arith.mulf %159, %160 : vector<8x32xf32>
    %162 = vector.broadcast %141 : vector<1x32xf32> to vector<8x32xf32>
    %163 = arith.addf %161, %162 : vector<8x32xf32>
    %164 = arith.truncf %163 : vector<8x32xf32> to vector<8x32xbf16>
    %c0_88 = arith.constant 0 : index
    %c0_89 = arith.constant 0 : index
    %c0_90 = arith.constant 0 : index
    %165 = vector.load %arg13[%c0_88, %c0_89, %c0_90] : memref<1x32x32xbf16, #tpu.memory_space<vmem>>, vector<1x32x32xbf16>
    %166 = vector.shape_cast %165 : vector<1x32x32xbf16> to vector<32x32xbf16>
    %cst_91 = arith.constant dense<0.000000e+00> : vector<8x32xf32>
    %167 = tpu.matmul %164, %166, %cst_91 {dimension_numbers = #tpu.dot_dimension_numbers<[1], [0], [0], [1], [0, 0, 1, 1], [], []>} : vector<8x32xbf16>, vector<32x32xbf16>, vector<8x32xf32> -> vector<8x32xf32>
    %c0_92 = arith.constant 0 : index
    %c0_93 = arith.constant 0 : index
    %c0_94 = arith.constant 0 : index
    %168 = vector.load %arg14[%c0_92, %c0_93, %c0_94] : memref<1x1x32xf32, #tpu.memory_space<vmem>>, vector<1x1x32xf32>
    %169 = vector.shape_cast %168 : vector<1x1x32xf32> to vector<1x32xf32>
    %170 = vector.broadcast %169 : vector<1x32xf32> to vector<8x32xf32>
    %171 = arith.addf %167, %170 : vector<8x32xf32>
    %cst_95 = arith.constant 5.000000e-01 : f32
    %172 = vector.broadcast %cst_95 : f32 to vector<8x32xf32>
    %173 = arith.mulf %172, %171 : vector<8x32xf32>
    %cst_96 = arith.constant 0.707106769 : f32
    %174 = vector.broadcast %cst_96 : f32 to vector<8x32xf32>
    %175 = arith.mulf %171, %174 : vector<8x32xf32>
    %176 = math.erf %175 : vector<8x32xf32>
    %cst_97 = arith.constant 1.000000e+00 : f32
    %177 = vector.broadcast %cst_97 : f32 to vector<8x32xf32>
    %178 = arith.addf %177, %176 : vector<8x32xf32>
    %179 = arith.mulf %173, %178 : vector<8x32xf32>
    %180 = arith.truncf %179 : vector<8x32xf32> to vector<8x32xbf16>
    %c0_98 = arith.constant 0 : index
    %c0_99 = arith.constant 0 : index
    %c0_100 = arith.constant 0 : index
    %181 = vector.load %arg15[%c0_98, %c0_99, %c0_100] : memref<1x32x32xbf16, #tpu.memory_space<vmem>>, vector<1x32x32xbf16>
    %182 = vector.shape_cast %181 : vector<1x32x32xbf16> to vector<32x32xbf16>
    %cst_101 = arith.constant dense<0.000000e+00> : vector<8x32xf32>
    %183 = tpu.matmul %180, %182, %cst_101 {dimension_numbers = #tpu.dot_dimension_numbers<[1], [0], [0], [1], [0, 0, 1, 1], [], []>} : vector<8x32xbf16>, vector<32x32xbf16>, vector<8x32xf32> -> vector<8x32xf32>
    %c0_102 = arith.constant 0 : index
    %c0_103 = arith.constant 0 : index
    %c0_104 = arith.constant 0 : index
    %184 = vector.load %arg16[%c0_102, %c0_103, %c0_104] : memref<1x1x32xf32, #tpu.memory_space<vmem>>, vector<1x1x32xf32>
    %185 = vector.shape_cast %184 : vector<1x1x32xf32> to vector<1x32xf32>
    %186 = vector.broadcast %185 : vector<1x32xf32> to vector<8x32xf32>
    %187 = arith.addf %183, %186 : vector<8x32xf32>
    %188 = arith.addf %187, %137 : vector<8x32xf32>
    %189 = vector.shape_cast %188 : vector<8x32xf32> to vector<1x8x32xf32>
    %c0_105 = arith.constant 0 : index
    %c0_106 = arith.constant 0 : index
    %c0_107 = arith.constant 0 : index
    %190 = vector.load %arg18[%c0_105, %c0_106, %c0_107] : memref<1x8x32xf32, #tpu.memory_space<vmem>>, vector<1x8x32xf32>
    tpu.vector_store %arg18[%c0_105, %c0_106, %c0_107], %189 {strides = array<i32>} : memref<1x8x32xf32, #tpu.memory_space<vmem>>, vector<1x8x32xf32>,
    %c1_i32 = arith.constant 1 : i32
    %191 = arith.cmpi eq, %arg1, %c1_i32 : i32
    %192 = arith.extui %191 : i1 to i32
    %c0_i32_108 = arith.constant 0 : i32
    %193 = arith.cmpi ne, %192, %c0_i32_108 : i32
    scf.if %193 {
      %c0_109 = arith.constant 0 : index
      %c0_110 = arith.constant 0 : index
      %c0_111 = arith.constant 0 : index
      %194 = vector.load %arg17[%c0_109, %c0_110, %c0_111] : memref<1x8x32xf32, #tpu.memory_space<vmem>>, vector<1x8x32xf32>
      tpu.vector_store %arg17[%c0_109, %c0_110, %c0_111], %189 {strides = array<i32>} : memref<1x8x32xf32, #tpu.memory_space<vmem>>, vector<1x8x32xf32>,
    } else {
    }
    return
  }
  func.func @transform_0(%arg0: i32, %arg1: i32) -> (i32, i32, i32) {
    %c0_i32 = arith.constant 0 : i32
    %c0_i32_0 = arith.constant 0 : i32
    %c0_i32_1 = arith.constant 0 : i32
    return %arg0, %c0_i32, %c0_i32_0 : i32, i32, i32
  }
  func.func @transform_1(%arg0: i32, %arg1: i32) -> (i32, i32, i32) {
    %c0_i32 = arith.constant 0 : i32
    %c0_i32_0 = arith.constant 0 : i32
    %c0_i32_1 = arith.constant 0 : i32
    return %arg1, %c0_i32, %c0_i32_0 : i32, i32, i32
  }
  func.func @transform_2(%arg0: i32, %arg1: i32) -> (i32, i32, i32) {
    %c0_i32 = arith.constant 0 : i32
    %c0_i32_0 = arith.constant 0 : i32
    %c0_i32_1 = arith.constant 0 : i32
    return %arg1, %c0_i32, %c0_i32_0 : i32, i32, i32
  }
  func.func @transform_3(%arg0: i32, %arg1: i32) -> (i32, i32, i32) {
    %c0_i32 = arith.constant 0 : i32
    %c0_i32_0 = arith.constant 0 : i32
    %c0_i32_1 = arith.constant 0 : i32
    return %arg1, %c0_i32, %c0_i32_0 : i32, i32, i32
  }
  func.func @transform_4(%arg0: i32, %arg1: i32) -> (i32, i32, i32) {
    %c0_i32 = arith.constant 0 : i32
    %c0_i32_0 = arith.constant 0 : i32
    %c0_i32_1 = arith.constant 0 : i32
    return %arg1, %c0_i32, %c0_i32_0 : i32, i32, i32
  }
  func.func @transform_5(%arg0: i32, %arg1: i32) -> (i32, i32, i32) {
    %c0_i32 = arith.constant 0 : i32
    %c0_i32_0 = arith.constant 0 : i32
    %c0_i32_1 = arith.constant 0 : i32
    return %arg1, %c0_i32, %c0_i32_0 : i32, i32, i32
  }
  func.func @transform_6(%arg0: i32, %arg1: i32) -> (i32, i32, i32) {
    %c0_i32 = arith.constant 0 : i32
    %c0_i32_0 = arith.constant 0 : i32
    %c0_i32_1 = arith.constant 0 : i32
    return %arg1, %c0_i32, %c0_i32_0 : i32, i32, i32
  }
  func.func @transform_7(%arg0: i32, %arg1: i32) -> (i32, i32, i32) {
    %c0_i32 = arith.constant 0 : i32
    %c0_i32_0 = arith.constant 0 : i32
    %c0_i32_1 = arith.constant 0 : i32
    return %arg1, %c0_i32, %c0_i32_0 : i32, i32, i32
  }
  func.func @transform_8(%arg0: i32, %arg1: i32) -> (i32, i32, i32) {
    %c0_i32 = arith.constant 0 : i32
    %c0_i32_0 = arith.constant 0 : i32
    %c0_i32_1 = arith.constant 0 : i32
    return %arg1, %c0_i32, %c0_i32_0 : i32, i32, i32
  }
  func.func @transform_9(%arg0: i32, %arg1: i32) -> (i32, i32, i32) {
    %c0_i32 = arith.constant 0 : i32
    %c0_i32_0 = arith.constant 0 : i32
    %c0_i32_1 = arith.constant 0 : i32
    return %arg1, %c0_i32, %c0_i32_0 : i32, i32, i32
  }
  func.func @transform_10(%arg0: i32, %arg1: i32) -> (i32, i32, i32) {
    %c0_i32 = arith.constant 0 : i32
    %c0_i32_0 = arith.constant 0 : i32
    %c0_i32_1 = arith.constant 0 : i32
    return %arg1, %c0_i32, %c0_i32_0 : i32, i32, i32
  }
  func.func @transform_11(%arg0: i32, %arg1: i32) -> (i32, i32, i32) {
    %c0_i32 = arith.constant 0 : i32
    %c0_i32_0 = arith.constant 0 : i32
    %c0_i32_1 = arith.constant 0 : i32
    return %arg1, %c0_i32, %c0_i32_0 : i32, i32, i32
  }
  func.func @transform_12(%arg0: i32, %arg1: i32) -> (i32, i32, i32) {
    %c0_i32 = arith.constant 0 : i32
    %c0_i32_0 = arith.constant 0 : i32
    %c0_i32_1 = arith.constant 0 : i32
    return %arg1, %c0_i32, %c0_i32_0 : i32, i32, i32
  }
  func.func @transform_13(%arg0: i32, %arg1: i32) -> (i32, i32, i32) {
    %c0_i32 = arith.constant 0 : i32
    %c0_i32_0 = arith.constant 0 : i32
    %c0_i32_1 = arith.constant 0 : i32
    return %arg1, %c0_i32, %c0_i32_0 : i32, i32, i32
  }
  func.func @transform_14(%arg0: i32, %arg1: i32) -> (i32, i32, i32) {
    %c0_i32 = arith.constant 0 : i32
    %c0_i32_0 = arith.constant 0 : i32
    %c0_i32_1 = arith.constant 0 : i32
    return %arg1, %c0_i32, %c0_i32_0 : i32, i32, i32
  }
  func.func @transform_15(%arg0: i32, %arg1: i32) -> (i32, i32, i32) {
    %c0_i32 = arith.constant 0 : i32
    %c0_i32_0 = arith.constant 0 : i32
    %c0_i32_1 = arith.constant 0 : i32
    return %arg0, %c0_i32, %c0_i32_0 : i32, i32, i32
  }
}

</mosaic_0001>

<llo_original>
// kernel: tpu_custom_call.1
$region0: #{tpu_custom_call.1}
  #allocation0 [shape = 'u32[]', space=smem, size = 0x4, offset = 0x4, fixed_abs, tag = 'smem constant byte address 0x4 - core index']
  #allocation1 [shape = 'u32[72,128]{1,0:T(1,128)}', space=vmem, size = 0x9000, scoped, tag = 'internal scratch']
  #allocation2 [shape = 'f32[1,8,32]{2,1,0:T(8,128)}', space=vmem, size = 0x1000, scoped, tag = 'scratch operand']
  #allocation3 [shape = 'f32[1,8,32]{2,1,0:T(8,128)}', space=vmem, size = 0x1000, scoped, tag = 'scratch operand']
  %s0 = inlined_call_operand.hbm [shape: f32[2,8,32], index: 0, kind: input, shape index: {}]
  %s1 = inlined_call_operand.hbm [shape: bf16[2,32,32], index: 1, kind: input, shape index: {}]
  %s2 = inlined_call_operand.hbm [shape: f32[2,1,32], index: 2, kind: input, shape index: {}]
  %s3 = inlined_call_operand.hbm [shape: bf16[2,32,32], index: 3, kind: input, shape index: {}]
  %s4 = inlined_call_operand.vmem [shape: f32[2,1,32], index: 4, kind: input, shape index: {}]
  %s5 = inlined_call_operand.hbm [shape: bf16[2,32,32], index: 5, kind: input, shape index: {}]
  %s6 = inlined_call_operand.vmem [shape: f32[2,1,32], index: 6, kind: input, shape index: {}]
  %s7 = inlined_call_operand.vmem [shape: f32[2,1,32], index: 7, kind: input, shape index: {}]
  %s8 = inlined_call_operand.hbm [shape: f32[2,1,32], index: 8, kind: input, shape index: {}]
  %s9 = inlined_call_operand.vmem [shape: f32[2,1,32], index: 9, kind: input, shape index: {}]
  %s10 = inlined_call_operand.hbm [shape: f32[2,1,32], index: 10, kind: input, shape index: {}]
  %s11 = inlined_call_operand.hbm [shape: bf16[2,32,32], index: 11, kind: input, shape index: {}]
  %s12 = inlined_call_operand.vmem [shape: f32[2,1,32], index: 12, kind: input, shape index: {}]
  %s13 = inlined_call_operand.hbm [shape: bf16[2,32,32], index: 13, kind: input, shape index: {}]
  %s14 = inlined_call_operand.vmem [shape: f32[2,1,32], index: 14, kind: input, shape index: {}]
  %s15 = inlined_call_operand.hbm [shape: f32[2,8,32], index: 15, kind: output, shape index: {}]
  %s16 = sld [smem:[#allocation0]]
  $region137: #{tpu_custom_call.1} parent=0
    _
  %s18 = ssub.s32 1, %s16
  %s19 = scalar_select 0, %s18, %s16
  $region1: #{tpu_custom_call.1} parent=0
    #allocation4 [shape = 'u8[8192]{0}', space=vmem, size = 0x2000, scoped, tag = 'input window, operand 0']
    #allocation5 [shape = 's32[2]{0}', space=sflag, size = 0x8, scoped, tag = 'scoped memory for tpu_custom_call.1']
    #allocation6 [shape = 's32[2]{0}', space=sflag, size = 0x8, scoped, tag = 'scoped memory for tpu_custom_call.1']
    #allocation7 [shape = 'u8[16384]{0}', space=vmem, size = 0x4000, scoped, tag = 'input window, operand 1']
    #allocation8 [shape = 's32[2]{0}', space=sflag, size = 0x8, scoped, tag = 'scoped memory for tpu_custom_call.1']
    #allocation9 [shape = 'u8[1024]{0}', space=vmem, size = 0x400, scoped, tag = 'input window, operand 2']
    #allocation10 [shape = 'u8[16384]{0}', space=vmem, size = 0x4000, scoped, tag = 'input window, operand 3']
    #allocation11 [shape = 's32[2]{0}', space=sflag, size = 0x8, scoped, tag = 'scoped memory for tpu_custom_call.1']
    #allocation12 [shape = 'u8[16384]{0}', space=vmem, size = 0x4000, scoped, tag = 'input window, operand 5']
    #allocation13 [shape = 'u8[1024]{0}', space=vmem, size = 0x400, scoped, tag = 'input window, operand 8']
    #allocation14 [shape = 's32[2]{0}', space=sflag, size = 0x8, scoped, tag = 'scoped memory for tpu_custom_call.1']
    #allocation15 [shape = 'u8[1024]{0}', space=vmem, size = 0x400, scoped, tag = 'input window, operand 10']
    #allocation16 [shape = 'u8[16384]{0}', space=vmem, size = 0x4000, scoped, tag = 'input window, operand 11']
    #allocation17 [shape = 's32[2]{0}', space=sflag, size = 0x8, scoped, tag = 'scoped memory for tpu_custom_call.1']
    #allocation18 [shape = 'u8[16384]{0}', space=vmem, size = 0x4000, scoped, tag = 'input window, operand 13']
    #allocation19 [shape = 'u8[8192]{0}', space=vmem, size = 0x2000, scoped, tag = 'output window, operand 0']
    %20 = vsyncpa [#allocation5], 0
    %s21 = scalar_lea.sflag [#allocation5], 1
    %22 = vsyncpa %s21, 0
    %23 = vsyncpa [#allocation8], 0
    %s24 = scalar_lea.sflag [#allocation8], 1
    %25 = vsyncpa %s24, 0
    %26 = vsyncpa [#allocation11], 0
    %s27 = scalar_lea.sflag [#allocation11], 1
    %28 = vsyncpa %s27, 0
    %29 = vsyncpa [#allocation14], 0
    %s30 = scalar_lea.sflag [#allocation14], 1
    %31 = vsyncpa %s30, 0
    %32 = vsyncpa [#allocation17], 0
    %s33 = scalar_lea.sflag [#allocation17], 1
    %34 = vsyncpa %s33, 0
    %35 = vsyncpa [#allocation6], 0
    %s36 = scalar_lea.sflag [#allocation6], 1
    %37 = vsyncpa %s36, 0
    loop: start=0, step=1, limit=6
    $region2: #{tpu_custom_call.1} parent=1 // loop_pre_header
      _
    $region3: #{tpu_custom_call.1} parent=1 // loop_header
      %s39 = sphi 0, %s43
      %p40 = scmp.ge.s32.totalorder %s39, 6
      %s46 = sphi 0, %s58
      %s47 = sphi 0, %s54
      %s48 = sphi 0, %s46
      %s49 = sphi 0, %s47
      %s50 = sphi 0, %s48
      %s51 = sphi 0, %s49
      %s61 = sphi 0, %s63
      %s64 = sphi 0, %s61
      %s65 = sphi 0, %s64
      %s81 = sphi 0, %s65
      %s87 = sphi 0, %s89
      %s90 = sphi 0, %s87
      %s91 = sphi 0, %s90
      %s107 = sphi 0, %s91
      %s113 = sphi 0, %s115
      %s116 = sphi 0, %s113
      %s117 = sphi 0, %s116
      %s133 = sphi 0, %s117
      %s139 = sphi 0, %s141
      %s142 = sphi 0, %s139
      %s143 = sphi 0, %s142
      %s159 = sphi 0, %s143
      %s165 = sphi 0, %s167
      %s168 = sphi 0, %s165
      %s169 = sphi 0, %s168
      %s185 = sphi 0, %s169
      %s191 = sphi 0, %s193
      %s194 = sphi 0, %s191
      %s195 = sphi 0, %s194
      %s211 = sphi 0, %s195
      %s217 = sphi 0, %s219
      %s220 = sphi 0, %s217
      %s221 = sphi 0, %s220
      %s237 = sphi 0, %s221
      %s243 = sphi 0, %s245
      %s246 = sphi 0, %s243
      %s247 = sphi 0, %s246
      %s263 = sphi 0, %s247
      %s269 = sphi 0, %s271
      %s272 = sphi 0, %s269
      %s273 = sphi 0, %s272
      %s289 = sphi 0, %s273
      %s295 = sphi 0, %s297
      %s298 = sphi 0, %s295
      %s299 = sphi 0, %s298
      %s315 = sphi 0, %s299
      %s321 = sphi 0, %s323
      %s324 = sphi 0, %s321
      %s325 = sphi 0, %s324
      %s341 = sphi 0, %s325
      %s347 = sphi 0, %s349
      %s350 = sphi 0, %s347
      %s351 = sphi 0, %s350
      %s367 = sphi 0, %s351
      %s373 = sphi 0, %s375
      %s376 = sphi 0, %s373
      %s377 = sphi 0, %s376
      %s393 = sphi 0, %s377
      %s399 = sphi 0, %s401
      %s402 = sphi 0, %s399
      %s403 = sphi 0, %s402
      %s419 = sphi 0, %s403
      %s425 = sphi 0, %s427
      %s428 = sphi 0, %s425
      %s429 = sphi 0, %s428
      %s445 = sphi 0, %s429
      %s451 = sphi 0, %s453
      %s454 = sphi 0, %s451
      %s455 = sphi 0, %s454
      %s471 = sphi 0, %s455
    $region4: #{tpu_custom_call.1} parent=1 // loop_header_branch
      %42 = sbr.rel (%p40) target = $region8
    $region5: #{tpu_custom_call.1} parent=1 // loop_body
      %s44 = ssub.s32 %s39, 1
      %s45 = ssub.s32 %s39, 2
      %s52 = sadd.s32 1, %s47
      %p53 = scmp.ge.s32.totalorder %s52, 2
      %s54 = scalar_select %p53, 0, %s52
      %s55 = sadd.s32 1, %s46
      %s56 = scalar_select %p53, %s55, %s46
      %p57 = scmp.ge.s32.totalorder %s56, 2
      %s58 = scalar_select %p57, 0, %s56
      %s59 = ssub.s32 %s46, %s58
      %p60 = scmp.eq.s32.totalorder %s59, 0
      %s62 = sadd.s32 %s61, 1
      %s63 = scalar_select %p60, %s61, %s62
      %p66 = pneg %p60
      %p67 = scmp.eq.s32.totalorder %s39, 3
      %p68 = por %p66, %p67
      %p69 = scmp.ne.s32.totalorder %s61, %s64
      %p70 = scmp.eq.s32.totalorder %s39, 0
      %p71 = por %p69, %p70
      %p72 = scmp.ne.s32.totalorder %s61, %s64
      %p73 = scmp.eq.s32.totalorder %s44, 3
      %p74 = por %p72, %p73
      %p75 = scmp.ne.s32.totalorder %s64, %s65
      %p76 = scmp.eq.s32.totalorder %s44, 0
      %p77 = por %p75, %p76
      %p78 = scmp.ne.s32.totalorder %s64, %s65
      %p79 = scmp.eq.s32.totalorder %s45, 3
      %p80 = por %p78, %p79
      %p82 = scmp.ne.s32.totalorder %s65, %s81
      %p83 = scmp.eq.s32.totalorder %s45, 0
      %p84 = por %p82, %p83
      %s85 = ssub.s32 %s47, %s54
      %p86 = scmp.eq.s32.totalorder %s85, 0
      %s88 = sadd.s32 %s87, 1
      %s89 = scalar_select %p86, %s87, %s88
      %p92 = pneg %p86
      %p93 = scmp.eq.s32.totalorder %s39, 3
      %p94 = por %p92, %p93
      %p95 = scmp.ne.s32.totalorder %s87, %s90
      %p96 = scmp.eq.s32.totalorder %s39, 0
      %p97 = por %p95, %p96
      %p98 = scmp.ne.s32.totalorder %s87, %s90
      %p99 = scmp.eq.s32.totalorder %s44, 3
      %p100 = por %p98, %p99
      %p101 = scmp.ne.s32.totalorder %s90, %s91
      %p102 = scmp.eq.s32.totalorder %s44, 0
      %p103 = por %p101, %p102
      %p104 = scmp.ne.s32.totalorder %s90, %s91
      %p105 = scmp.eq.s32.totalorder %s45, 3
      %p106 = por %p104, %p105
      %p108 = scmp.ne.s32.totalorder %s91, %s107
      %p109 = scmp.eq.s32.totalorder %s45, 0
      %p110 = por %p108, %p109
      %s111 = ssub.s32 %s47, %s54
      %p112 = scmp.eq.s32.totalorder %s111, 0
      %s114 = sadd.s32 %s113, 1
      %s115 = scalar_select %p112, %s113, %s114
      %p118 = pneg %p112
      %p119 = scmp.eq.s32.totalorder %s39, 3
      %p120 = por %p118, %p119
      %p121 = scmp.ne.s32.totalorder %s113, %s116
      %p122 = scmp.eq.s32.totalorder %s39, 0
      %p123 = por %p121, %p122
      %p124 = scmp.ne.s32.totalorder %s113, %s116
      %p125 = scmp.eq.s32.totalorder %s44, 3
      %p126 = por %p124, %p125
      %p127 = scmp.ne.s32.totalorder %s116, %s117
      %p128 = scmp.eq.s32.totalorder %s44, 0
      %p129 = por %p127, %p128
      %p130 = scmp.ne.s32.totalorder %s116, %s117
      %p131 = scmp.eq.s32.totalorder %s45, 3
      %p132 = por %p130, %p131
      %p134 = scmp.ne.s32.totalorder %s117, %s133
      %p135 = scmp.eq.s32.totalorder %s45, 0
      %p136 = por %p134, %p135
      %s137 = ssub.s32 %s47, %s54
      %p138 = scmp.eq.s32.totalorder %s137, 0
      %s140 = sadd.s32 %s139, 1
      %s141 = scalar_select %p138, %s139, %s140
      %p144 = pneg %p138
      %p145 = scmp.eq.s32.totalorder %s39, 3
      %p146 = por %p144, %p145
      %p147 = scmp.ne.s32.totalorder %s139, %s142
      %p148 = scmp.eq.s32.totalorder %s39, 0
      %p149 = por %p147, %p148
      %p150 = scmp.ne.s32.totalorder %s139, %s142
      %p151 = scmp.eq.s32.totalorder %s44, 3
      %p152 = por %p150, %p151
      %p153 = scmp.ne.s32.totalorder %s142, %s143
      %p154 = scmp.eq.s32.totalorder %s44, 0
      %p155 = por %p153, %p154
      %p156 = scmp.ne.s32.totalorder %s142, %s143
      %p157 = scmp.eq.s32.totalorder %s45, 3
      %p158 = por %p156, %p157
      %p160 = scmp.ne.s32.totalorder %s143, %s159
      %p161 = scmp.eq.s32.totalorder %s45, 0
      %p162 = por %p160, %p161
      %s163 = ssub.s32 %s47, %s54
      %p164 = scmp.eq.s32.totalorder %s163, 0
      %s166 = sadd.s32 %s165, 1
      %s167 = scalar_select %p164, %s165, %s166
      %p170 = pneg %p164
      %p171 = scmp.eq.s32.totalorder %s39, 3
      %p172 = por %p170, %p171
      %p173 = scmp.ne.s32.totalorder %s165, %s168
      %p174 = scmp.eq.s32.totalorder %s39, 0
      %p175 = por %p173, %p174
      %p176 = scmp.ne.s32.totalorder %s165, %s168
      %p177 = scmp.eq.s32.totalorder %s44, 3
      %p178 = por %p176, %p177
      %p179 = scmp.ne.s32.totalorder %s168, %s169
      %p180 = scmp.eq.s32.totalorder %s44, 0
      %p181 = por %p179, %p180
      %p182 = scmp.ne.s32.totalorder %s168, %s169
      %p183 = scmp.eq.s32.totalorder %s45, 3
      %p184 = por %p182, %p183
      %p186 = scmp.ne.s32.totalorder %s169, %s185
      %p187 = scmp.eq.s32.totalorder %s45, 0
      %p188 = por %p186, %p187
      %s189 = ssub.s32 %s47, %s54
      %p190 = scmp.eq.s32.totalorder %s189, 0
      %s192 = sadd.s32 %s191, 1
      %s193 = scalar_select %p190, %s191, %s192
      %p196 = pneg %p190
      %p197 = scmp.eq.s32.totalorder %s39, 3
      %p198 = por %p196, %p197
      %p199 = scmp.ne.s32.totalorder %s191, %s194
      %p200 = scmp.eq.s32.totalorder %s39, 0
      %p201 = por %p199, %p200
      %p202 = scmp.ne.s32.totalorder %s191, %s194
      %p203 = scmp.eq.s32.totalorder %s44, 3
      %p204 = por %p202, %p203
      %p205 = scmp.ne.s32.totalorder %s194, %s195
      %p206 = scmp.eq.s32.totalorder %s44, 0
      %p207 = por %p205, %p206
      %p208 = scmp.ne.s32.totalorder %s194, %s195
      %p209 = scmp.eq.s32.totalorder %s45, 3
      %p210 = por %p208, %p209
      %p212 = scmp.ne.s32.totalorder %s195, %s211
      %p213 = scmp.eq.s32.totalorder %s45, 0
      %p214 = por %p212, %p213
      %s215 = ssub.s32 %s47, %s54
      %p216 = scmp.eq.s32.totalorder %s215, 0
      %s218 = sadd.s32 %s217, 1
      %s219 = scalar_select %p216, %s217, %s218
      %p222 = pneg %p216
      %p223 = scmp.eq.s32.totalorder %s39, 3
      %p224 = por %p222, %p223
      %p225 = scmp.ne.s32.totalorder %s217, %s220
      %p226 = scmp.eq.s32.totalorder %s39, 0
      %p227 = por %p225, %p226
      %p228 = scmp.ne.s32.totalorder %s217, %s220
      %p229 = scmp.eq.s32.totalorder %s44, 3
      %p230 = por %p228, %p229
      %p231 = scmp.ne.s32.totalorder %s220, %s221
      %p232 = scmp.eq.s32.totalorder %s44, 0
      %p233 = por %p231, %p232
      %p234 = scmp.ne.s32.totalorder %s220, %s221
      %p235 = scmp.eq.s32.totalorder %s45, 3
      %p236 = por %p234, %p235
      %p238 = scmp.ne.s32.totalorder %s221, %s237
      %p239 = scmp.eq.s32.totalorder %s45, 0
      %p240 = por %p238, %p239
      %s241 = ssub.s32 %s47, %s54
      %p242 = scmp.eq.s32.totalorder %s241, 0
      %s244 = sadd.s32 %s243, 1
      %s245 = scalar_select %p242, %s243, %s244
      %p248 = pneg %p242
      %p249 = scmp.eq.s32.totalorder %s39, 3
      %p250 = por %p248, %p249
      %p251 = scmp.ne.s32.totalorder %s243, %s246
      %p252 = scmp.eq.s32.totalorder %s39, 0
      %p253 = por %p251, %p252
      %p254 = scmp.ne.s32.totalorder %s243, %s246
      %p255 = scmp.eq.s32.totalorder %s44, 3
      %p256 = por %p254, %p255
      %p257 = scmp.ne.s32.totalorder %s246, %s247
      %p258 = scmp.eq.s32.totalorder %s44, 0
      %p259 = por %p257, %p258
      %p260 = scmp.ne.s32.totalorder %s246, %s247
      %p261 = scmp.eq.s32.totalorder %s45, 3
      %p262 = por %p260, %p261
      %p264 = scmp.ne.s32.totalorder %s247, %s263
      %p265 = scmp.eq.s32.totalorder %s45, 0
      %p266 = por %p264, %p265
      %s267 = ssub.s32 %s47, %s54
      %p268 = scmp.eq.s32.totalorder %s267, 0
      %s270 = sadd.s32 %s269, 1
      %s271 = scalar_select %p268, %s269, %s270
      %p274 = pneg %p268
      %p275 = scmp.eq.s32.totalorder %s39, 3
      %p276 = por %p274, %p275
      %p277 = scmp.ne.s32.totalorder %s269, %s272
      %p278 = scmp.eq.s32.totalorder %s39, 0
      %p279 = por %p277, %p278
      %p280 = scmp.ne.s32.totalorder %s269, %s272
      %p281 = scmp.eq.s32.totalorder %s44, 3
      %p282 = por %p280, %p281
      %p283 = scmp.ne.s32.totalorder %s272, %s273
      %p284 = scmp.eq.s32.totalorder %s44, 0
      %p285 = por %p283, %p284
      %p286 = scmp.ne.s32.totalorder %s272, %s273
      %p287 = scmp.eq.s32.totalorder %s45, 3
      %p288 = por %p286, %p287
      %p290 = scmp.ne.s32.totalorder %s273, %s289
      %p291 = scmp.eq.s32.totalorder %s45, 0
      %p292 = por %p290, %p291
      %s293 = ssub.s32 %s47, %s54
      %p294 = scmp.eq.s32.totalorder %s293, 0
      %s296 = sadd.s32 %s295, 1
      %s297 = scalar_select %p294, %s295, %s296
      %p300 = pneg %p294
      %p301 = scmp.eq.s32.totalorder %s39, 3
      %p302 = por %p300, %p301
      %p303 = scmp.ne.s32.totalorder %s295, %s298
      %p304 = scmp.eq.s32.totalorder %s39, 0
      %p305 = por %p303, %p304
      %p306 = scmp.ne.s32.totalorder %s295, %s298
      %p307 = scmp.eq.s32.totalorder %s44, 3
      %p308 = por %p306, %p307
      %p309 = scmp.ne.s32.totalorder %s298, %s299
      %p310 = scmp.eq.s32.totalorder %s44, 0
      %p311 = por %p309, %p310
      %p312 = scmp.ne.s32.totalorder %s298, %s299
      %p313 = scmp.eq.s32.totalorder %s45, 3
      %p314 = por %p312, %p313
      %p316 = scmp.ne.s32.totalorder %s299, %s315
      %p317 = scmp.eq.s32.totalorder %s45, 0
      %p318 = por %p316, %p317
      %s319 = ssub.s32 %s47, %s54
      %p320 = scmp.eq.s32.totalorder %s319, 0
      %s322 = sadd.s32 %s321, 1
      %s323 = scalar_select %p320, %s321, %s322
      %p326 = pneg %p320
      %p327 = scmp.eq.s32.totalorder %s39, 3
      %p328 = por %p326, %p327
      %p329 = scmp.ne.s32.totalorder %s321, %s324
      %p330 = scmp.eq.s32.totalorder %s39, 0
      %p331 = por %p329, %p330
      %p332 = scmp.ne.s32.totalorder %s321, %s324
      %p333 = scmp.eq.s32.totalorder %s44, 3
      %p334 = por %p332, %p333
      %p335 = scmp.ne.s32.totalorder %s324, %s325
      %p336 = scmp.eq.s32.totalorder %s44, 0
      %p337 = por %p335, %p336
      %p338 = scmp.ne.s32.totalorder %s324, %s325
      %p339 = scmp.eq.s32.totalorder %s45, 3
      %p340 = por %p338, %p339
      %p342 = scmp.ne.s32.totalorder %s325, %s341
      %p343 = scmp.eq.s32.totalorder %s45, 0
      %p344 = por %p342, %p343
      %s345 = ssub.s32 %s47, %s54
      %p346 = scmp.eq.s32.totalorder %s345, 0
      %s348 = sadd.s32 %s347, 1
      %s349 = scalar_select %p346, %s347, %s348
      %p352 = pneg %p346
      %p353 = scmp.eq.s32.totalorder %s39, 3
      %p354 = por %p352, %p353
      %p355 = scmp.ne.s32.totalorder %s347, %s350
      %p356 = scmp.eq.s32.totalorder %s39, 0
      %p357 = por %p355, %p356
      %p358 = scmp.ne.s32.totalorder %s347, %s350
      %p359 = scmp.eq.s32.totalorder %s44, 3
      %p360 = por %p358, %p359
      %p361 = scmp.ne.s32.totalorder %s350, %s351
      %p362 = scmp.eq.s32.totalorder %s44, 0
      %p363 = por %p361, %p362
      %p364 = scmp.ne.s32.totalorder %s350, %s351
      %p365 = scmp.eq.s32.totalorder %s45, 3
      %p366 = por %p364, %p365
      %p368 = scmp.ne.s32.totalorder %s351, %s367
      %p369 = scmp.eq.s32.totalorder %s45, 0
      %p370 = por %p368, %p369
      %s371 = ssub.s32 %s47, %s54
      %p372 = scmp.eq.s32.totalorder %s371, 0
      %s374 = sadd.s32 %s373, 1
      %s375 = scalar_select %p372, %s373, %s374
      %p378 = pneg %p372
      %p379 = scmp.eq.s32.totalorder %s39, 3
      %p380 = por %p378, %p379
      %p381 = scmp.ne.s32.totalorder %s373, %s376
      %p382 = scmp.eq.s32.totalorder %s39, 0
      %p383 = por %p381, %p382
      %p384 = scmp.ne.s32.totalorder %s373, %s376
      %p385 = scmp.eq.s32.totalorder %s44, 3
      %p386 = por %p384, %p385
      %p387 = scmp.ne.s32.totalorder %s376, %s377
      %p388 = scmp.eq.s32.totalorder %s44, 0
      %p389 = por %p387, %p388
      %p390 = scmp.ne.s32.totalorder %s376, %s377
      %p391 = scmp.eq.s32.totalorder %s45, 3
      %p392 = por %p390, %p391
      %p394 = scmp.ne.s32.totalorder %s377, %s393
      %p395 = scmp.eq.s32.totalorder %s45, 0
      %p396 = por %p394, %p395
      %s397 = ssub.s32 %s47, %s54
      %p398 = scmp.eq.s32.totalorder %s397, 0
      %s400 = sadd.s32 %s399, 1
      %s401 = scalar_select %p398, %s399, %s400
      %p404 = pneg %p398
      %p405 = scmp.eq.s32.totalorder %s39, 3
      %p406 = por %p404, %p405
      %p407 = scmp.ne.s32.totalorder %s399, %s402
      %p408 = scmp.eq.s32.totalorder %s39, 0
      %p409 = por %p407, %p408
      %p410 = scmp.ne.s32.totalorder %s399, %s402
      %p411 = scmp.eq.s32.totalorder %s44, 3
      %p412 = por %p410, %p411
      %p413 = scmp.ne.s32.totalorder %s402, %s403
      %p414 = scmp.eq.s32.totalorder %s44, 0
      %p415 = por %p413, %p414
      %p416 = scmp.ne.s32.totalorder %s402, %s403
      %p417 = scmp.eq.s32.totalorder %s45, 3
      %p418 = por %p416, %p417
      %p420 = scmp.ne.s32.totalorder %s403, %s419
      %p421 = scmp.eq.s32.totalorder %s45, 0
      %p422 = por %p420, %p421
      %s423 = ssub.s32 %s47, %s54
      %p424 = scmp.eq.s32.totalorder %s423, 0
      %s426 = sadd.s32 %s425, 1
      %s427 = scalar_select %p424, %s425, %s426
      %p430 = pneg %p424
      %p431 = scmp.eq.s32.totalorder %s39, 3
      %p432 = por %p430, %p431
      %p433 = scmp.ne.s32.totalorder %s425, %s428
      %p434 = scmp.eq.s32.totalorder %s39, 0
      %p435 = por %p433, %p434
      %p436 = scmp.ne.s32.totalorder %s425, %s428
      %p437 = scmp.eq.s32.totalorder %s44, 3
      %p438 = por %p436, %p437
      %p439 = scmp.ne.s32.totalorder %s428, %s429
      %p440 = scmp.eq.s32.totalorder %s44, 0
      %p441 = por %p439, %p440
      %p442 = scmp.ne.s32.totalorder %s428, %s429
      %p443 = scmp.eq.s32.totalorder %s45, 3
      %p444 = por %p442, %p443
      %p446 = scmp.ne.s32.totalorder %s429, %s445
      %p447 = scmp.eq.s32.totalorder %s45, 0
      %p448 = por %p446, %p447
      %s449 = ssub.s32 %s46, %s58
      %p450 = scmp.eq.s32.totalorder %s449, 0
      %s452 = sadd.s32 %s451, 1
      %s453 = scalar_select %p450, %s451, %s452
      %p456 = pneg %p450
      %p457 = scmp.eq.s32.totalorder %s39, 3
      %p458 = por %p456, %p457
      %p459 = scmp.ne.s32.totalorder %s451, %s454
      %p460 = scmp.eq.s32.totalorder %s39, 0
      %p461 = por %p459, %p460
      %p462 = scmp.ne.s32.totalorder %s451, %s454
      %p463 = scmp.eq.s32.totalorder %s44, 3
      %p464 = por %p462, %p463
      %p465 = scmp.ne.s32.totalorder %s454, %s455
      %p466 = scmp.eq.s32.totalorder %s44, 0
      %p467 = por %p465, %p466
      %p468 = scmp.ne.s32.totalorder %s454, %s455
      %p469 = scmp.eq.s32.totalorder %s45, 3
      %p470 = por %p468, %p469
      %p472 = scmp.ne.s32.totalorder %s455, %s471
      %p473 = scmp.eq.s32.totalorder %s45, 0
      %p474 = por %p472, %p473
      %p475 = scmp.le.s32.totalorder 1, %s39
      %p476 = scmp.lt.s32.totalorder %s39, 5
      %p477 = pnand %p475, %p476
      %p478 = pneg %p477
      // Predicated region
      $region9: #{tpu_custom_call.1} parent=5 // pred_check
        _
      $region10: #{tpu_custom_call.1} parent=5 // pred_check_branch
        %480 = sbr.rel (%p477) target = $region12
      $region11: #{tpu_custom_call.1} parent=5 // pred_region
        %s481 = ssub.s32 %s39, 1
      $region12: #{tpu_custom_call.1} parent=5 // pred_fallthru
        _
      %p482 = scmp.lt.s32.totalorder %s39, 4
      // Predicated region
      $region13: #{tpu_custom_call.1} parent=5 // pred_check
        %p483 = pneg %p482
      $region14: #{tpu_custom_call.1} parent=5 // pred_check_branch
        %485 = sbr.rel (%p483) target = $region16
      $region15: #{tpu_custom_call.1} parent=5 // pred_region
        // Predicated region
        $region17: #{tpu_custom_call.1} parent=15 // pred_check
          %p486 = pneg %p71
        $region18: #{tpu_custom_call.1} parent=15 // pred_check_branch
          %488 = sbr.rel (%p486) target = $region20
        $region19: #{tpu_custom_call.1} parent=15 // pred_region
          %s489 = sand.u32 %s61, 1
          %s490 = scalar_lea.sflag [#allocation5], %s489
          %s491 = sand.u32 %s61, 1
          %s492 = smul.addr %s491, 8
          %s493 = scalar_lea.vmem [#allocation4], %s492
          %495 = vsyncadd %s490, 0
          %s496 = smul.addr %s46, 8
          %s497 = scalar_lea.hbm %s0, %s496
          %s499 = sshll.u32 %s497, 4
          %s500 = int_to_ptr.hbm [resolvable:$true] %s499
          %s501 = sshll.u32 %s493, 4
          %s502 = int_to_ptr.vmem [resolvable:$true] %s501
          %504 = dma.hbm_to_vmem [thread:$0]  %s500, 128, %s502, %s490
        $region20: #{tpu_custom_call.1} parent=15 // pred_fallthru
          _
        // Predicated region
        $region21: #{tpu_custom_call.1} parent=15 // pred_check
          %p505 = pneg %p97
        $region22: #{tpu_custom_call.1} parent=15 // pred_check_branch
          %507 = sbr.rel (%p505) target = $region24
        $region23: #{tpu_custom_call.1} parent=15 // pred_region
          %s508 = sand.u32 %s39, 1
          %s509 = scalar_lea.sflag [#allocation8], %s508
          %s510 = sand.u32 %s87, 1
          %s511 = smul.addr %s510, 16
          %s512 = scalar_lea.vmem [#allocation7], %s511
          %514 = vsyncadd %s509, 0
          %s515 = smul.addr %s47, 4
          %s516 = smul.addr %s515, 4
          %s517 = scalar_lea.hbm %s1, %s516
          %s518 = sshll.u32 %s517, 4
          %s519 = int_to_ptr.hbm [resolvable:$true] %s518
          %s520 = sshll.u32 %s512, 4
          %s521 = int_to_ptr.vmem [resolvable:$true] %s520
          %526 = dma.hbm_to_vmem [thread:$0]  %s519, 256, %s521, %s509, 64, 64, 4
        $region24: #{tpu_custom_call.1} parent=15 // pred_fallthru
          _
        // Predicated region
        $region25: #{tpu_custom_call.1} parent=15 // pred_check
          %p527 = pneg %p123
        $region26: #{tpu_custom_call.1} parent=15 // pred_check_branch
          %529 = sbr.rel (%p527) target = $region28
        $region27: #{tpu_custom_call.1} parent=15 // pred_region
          %s530 = sand.u32 %s39, 1
          %s531 = scalar_lea.sflag [#allocation8], %s530
          %s532 = sand.u32 %s113, 1
          %s533 = scalar_lea.vmem [#allocation9], %s532
          %535 = vsyncadd %s531, 0
          %s536 = scalar_lea.hbm %s2, %s47
          %s538 = sshll.u32 %s536, 4
          %s539 = int_to_ptr.hbm [resolvable:$true] %s538
          %s540 = sshll.u32 %s533, 4
          %s541 = int_to_ptr.vmem [resolvable:$true] %s540
          %543 = dma.hbm_to_vmem [thread:$0]  %s539, 16, %s541, %s531
        $region28: #{tpu_custom_call.1} parent=15 // pred_fallthru
          _
        // Predicated region
        $region29: #{tpu_custom_call.1} parent=15 // pred_check
          %p544 = pneg %p149
        $region30: #{tpu_custom_call.1} parent=15 // pred_check_branch
          %546 = sbr.rel (%p544) target = $region32
        $region31: #{tpu_custom_call.1} parent=15 // pred_region
          %s547 = sand.u32 %s39, 1
          %s548 = scalar_lea.sflag [#allocation11], %s547
          %s549 = sand.u32 %s139, 1
          %s550 = smul.addr %s549, 16
          %s551 = scalar_lea.vmem [#allocation10], %s550
          %553 = vsyncadd %s548, 0
          %s554 = smul.addr %s47, 4
          %s555 = smul.addr %s554, 4
          %s556 = scalar_lea.hbm %s3, %s555
          %s557 = sshll.u32 %s556, 4
          %s558 = int_to_ptr.hbm [resolvable:$true] %s557
          %s559 = sshll.u32 %s551, 4
          %s560 = int_to_ptr.vmem [resolvable:$true] %s559
          %565 = dma.hbm_to_vmem [thread:$0]  %s558, 256, %s560, %s548, 64, 64, 4
        $region32: #{tpu_custom_call.1} parent=15 // pred_fallthru
          _
        // Predicated region
        $region33: #{tpu_custom_call.1} parent=15 // pred_check
          %p566 = pneg %p175
        $region34: #{tpu_custom_call.1} parent=15 // pred_check_branch
          %568 = sbr.rel (%p566) target = $region36
        $region35: #{tpu_custom_call.1} parent=15 // pred_region
          %p569 = scmp.lt.s32.totalorder %s47, 1
          %s570 = scalar_select %p569, %s47, 1
          %s571 = scalar_lea.vmem %s4, %s570
        $region36: #{tpu_custom_call.1} parent=15 // pred_fallthru
          _
        // Predicated region
        $region37: #{tpu_custom_call.1} parent=15 // pred_check
          %p572 = pneg %p201
        $region38: #{tpu_custom_call.1} parent=15 // pred_check_branch
          %574 = sbr.rel (%p572) target = $region40
        $region39: #{tpu_custom_call.1} parent=15 // pred_region
          %s575 = sand.u32 %s39, 1
          %s576 = scalar_lea.sflag [#allocation11], %s575
          %s577 = sand.u32 %s191, 1
          %s578 = smul.addr %s577, 16
          %s579 = scalar_lea.vmem [#allocation12], %s578
          %581 = vsyncadd %s576, 0
          %s582 = smul.addr %s47, 4
          %s583 = smul.addr %s582, 4
          %s584 = scalar_lea.hbm %s5, %s583
          %s585 = sshll.u32 %s584, 4
          %s586 = int_to_ptr.hbm [resolvable:$true] %s585
          %s587 = sshll.u32 %s579, 4
          %s588 = int_to_ptr.vmem [resolvable:$true] %s587
          %593 = dma.hbm_to_vmem [thread:$0]  %s586, 256, %s588, %s576, 64, 64, 4
        $region40: #{tpu_custom_call.1} parent=15 // pred_fallthru
          _
        // Predicated region
        $region41: #{tpu_custom_call.1} parent=15 // pred_check
          %p594 = pneg %p227
        $region42: #{tpu_custom_call.1} parent=15 // pred_check_branch
          %596 = sbr.rel (%p594) target = $region44
        $region43: #{tpu_custom_call.1} parent=15 // pred_region
          %p597 = scmp.lt.s32.totalorder %s47, 1
          %s598 = scalar_select %p597, %s47, 1
          %s599 = scalar_lea.vmem %s6, %s598
        $region44: #{tpu_custom_call.1} parent=15 // pred_fallthru
          _
        // Predicated region
        $region45: #{tpu_custom_call.1} parent=15 // pred_check
          %p600 = pneg %p253
        $region46: #{tpu_custom_call.1} parent=15 // pred_check_branch
          %602 = sbr.rel (%p600) target = $region48
        $region47: #{tpu_custom_call.1} parent=15 // pred_region
          %p603 = scmp.lt.s32.totalorder %s47, 1
          %s604 = scalar_select %p603, %s47, 1
          %s605 = scalar_lea.vmem %s7, %s604
        $region48: #{tpu_custom_call.1} parent=15 // pred_fallthru
          _
        // Predicated region
        $region49: #{tpu_custom_call.1} parent=15 // pred_check
          %p606 = pneg %p279
        $region50: #{tpu_custom_call.1} parent=15 // pred_check_branch
          %608 = sbr.rel (%p606) target = $region52
        $region51: #{tpu_custom_call.1} parent=15 // pred_region
          %s609 = sand.u32 %s39, 1
          %s610 = scalar_lea.sflag [#allocation14], %s609
          %s611 = sand.u32 %s269, 1
          %s612 = scalar_lea.vmem [#allocation13], %s611
          %614 = vsyncadd %s610, 0
          %s615 = scalar_lea.hbm %s8, %s47
          %s617 = sshll.u32 %s615, 4
          %s618 = int_to_ptr.hbm [resolvable:$true] %s617
          %s619 = sshll.u32 %s612, 4
          %s620 = int_to_ptr.vmem [resolvable:$true] %s619
          %622 = dma.hbm_to_vmem [thread:$0]  %s618, 16, %s620, %s610
        $region52: #{tpu_custom_call.1} parent=15 // pred_fallthru
          _
        // Predicated region
        $region53: #{tpu_custom_call.1} parent=15 // pred_check
          %p623 = pneg %p305
        $region54: #{tpu_custom_call.1} parent=15 // pred_check_branch
          %625 = sbr.rel (%p623) target = $region56
        $region55: #{tpu_custom_call.1} parent=15 // pred_region
          %p626 = scmp.lt.s32.totalorder %s47, 1
          %s627 = scalar_select %p626, %s47, 1
          %s628 = scalar_lea.vmem %s9, %s627
        $region56: #{tpu_custom_call.1} parent=15 // pred_fallthru
          _
        // Predicated region
        $region57: #{tpu_custom_call.1} parent=15 // pred_check
          %p629 = pneg %p331
        $region58: #{tpu_custom_call.1} parent=15 // pred_check_branch
          %631 = sbr.rel (%p629) target = $region60
        $region59: #{tpu_custom_call.1} parent=15 // pred_region
          %s632 = sand.u32 %s39, 1
          %s633 = scalar_lea.sflag [#allocation14], %s632
          %s634 = sand.u32 %s321, 1
          %s635 = scalar_lea.vmem [#allocation15], %s634
          %637 = vsyncadd %s633, 0
          %s638 = scalar_lea.hbm %s10, %s47
          %s640 = sshll.u32 %s638, 4
          %s641 = int_to_ptr.hbm [resolvable:$true] %s640
          %s642 = sshll.u32 %s635, 4
          %s643 = int_to_ptr.vmem [resolvable:$true] %s642
          %645 = dma.hbm_to_vmem [thread:$0]  %s641, 16, %s643, %s633
        $region60: #{tpu_custom_call.1} parent=15 // pred_fallthru
          _
        // Predicated region
        $region61: #{tpu_custom_call.1} parent=15 // pred_check
          %p646 = pneg %p357
        $region62: #{tpu_custom_call.1} parent=15 // pred_check_branch
          %648 = sbr.rel (%p646) target = $region64
        $region63: #{tpu_custom_call.1} parent=15 // pred_region
          %s649 = sand.u32 %s39, 1
          %s650 = scalar_lea.sflag [#allocation17], %s649
          %s651 = sand.u32 %s347, 1
          %s652 = smul.addr %s651, 16
          %s653 = scalar_lea.vmem [#allocation16], %s652
          %655 = vsyncadd %s650, 0
          %s656 = smul.addr %s47, 4
          %s657 = smul.addr %s656, 4
          %s658 = scalar_lea.hbm %s11, %s657
          %s659 = sshll.u32 %s658, 4
          %s660 = int_to_ptr.hbm [resolvable:$true] %s659
          %s661 = sshll.u32 %s653, 4
          %s662 = int_to_ptr.vmem [resolvable:$true] %s661
          %667 = dma.hbm_to_vmem [thread:$0]  %s660, 256, %s662, %s650, 64, 64, 4
        $region64: #{tpu_custom_call.1} parent=15 // pred_fallthru
          _
        // Predicated region
        $region65: #{tpu_custom_call.1} parent=15 // pred_check
          %p668 = pneg %p383
        $region66: #{tpu_custom_call.1} parent=15 // pred_check_branch
          %670 = sbr.rel (%p668) target = $region68
        $region67: #{tpu_custom_call.1} parent=15 // pred_region
          %p671 = scmp.lt.s32.totalorder %s47, 1
          %s672 = scalar_select %p671, %s47, 1
          %s673 = scalar_lea.vmem %s12, %s672
        $region68: #{tpu_custom_call.1} parent=15 // pred_fallthru
          _
        // Predicated region
        $region69: #{tpu_custom_call.1} parent=15 // pred_check
          %p674 = pneg %p409
        $region70: #{tpu_custom_call.1} parent=15 // pred_check_branch
          %676 = sbr.rel (%p674) target = $region72
        $region71: #{tpu_custom_call.1} parent=15 // pred_region
          %s677 = sand.u32 %s39, 1
          %s678 = scalar_lea.sflag [#allocation17], %s677
          %s679 = sand.u32 %s399, 1
          %s680 = smul.addr %s679, 16
          %s681 = scalar_lea.vmem [#allocation18], %s680
          %683 = vsyncadd %s678, 0
          %s684 = smul.addr %s47, 4
          %s685 = smul.addr %s684, 4
          %s686 = scalar_lea.hbm %s13, %s685
          %s687 = sshll.u32 %s686, 4
          %s688 = int_to_ptr.hbm [resolvable:$true] %s687
          %s689 = sshll.u32 %s681, 4
          %s690 = int_to_ptr.vmem [resolvable:$true] %s689
          %695 = dma.hbm_to_vmem [thread:$0]  %s688, 256, %s690, %s678, 64, 64, 4
        $region72: #{tpu_custom_call.1} parent=15 // pred_fallthru
          _
        // Predicated region
        $region73: #{tpu_custom_call.1} parent=15 // pred_check
          %p696 = pneg %p435
        $region74: #{tpu_custom_call.1} parent=15 // pred_check_branch
          %698 = sbr.rel (%p696) target = $region76
        $region75: #{tpu_custom_call.1} parent=15 // pred_region
          %p699 = scmp.lt.s32.totalorder %s47, 1
          %s700 = scalar_select %p699, %s47, 1
          %s701 = scalar_lea.vmem %s14, %s700
        $region76: #{tpu_custom_call.1} parent=15 // pred_fallthru
          _
      $region16: #{tpu_custom_call.1} parent=5 // pred_fallthru
        _
      %p702 = scmp.le.s32.totalorder 1, %s39
      %p703 = scmp.lt.s32.totalorder %s39, 5
      %p704 = pnand %p702, %p703
      %p705 = pneg %p704
      // Predicated region
      $region77: #{tpu_custom_call.1} parent=5 // pred_check
        _
      $region78: #{tpu_custom_call.1} parent=5 // pred_check_branch
        %707 = sbr.rel (%p704) target = $region80
      $region79: #{tpu_custom_call.1} parent=5 // pred_region
        %s708 = ssub.s32 %s39, 1
        %s709 = sand.u32 %s64, 1
        %s710 = scalar_lea.sflag [#allocation5], %s709
        %s711 = sand.u32 %s64, 1
        %s712 = smul.addr %s711, 8
        %s713 = scalar_lea.vmem [#allocation4], %s712
        // Predicated region
        $region81: #{tpu_custom_call.1} parent=79 // pred_check
          %p714 = pneg %p77
        $region82: #{tpu_custom_call.1} parent=79 // pred_check_branch
          %716 = sbr.rel (%p714) target = $region84
        $region83: #{tpu_custom_call.1} parent=79 // pred_region
          %718 = dma.done %s710, 128
        $region84: #{tpu_custom_call.1} parent=79 // pred_fallthru
          _
        %s719 = sand.u32 %s44, 1
        %s720 = scalar_lea.sflag [#allocation8], %s719
        %s721 = sand.u32 %s90, 1
        %s722 = smul.addr %s721, 16
        %s723 = scalar_lea.vmem [#allocation7], %s722
        // Predicated region
        $region85: #{tpu_custom_call.1} parent=79 // pred_check
          %p724 = pneg %p103
        $region86: #{tpu_custom_call.1} parent=79 // pred_check_branch
          %726 = sbr.rel (%p724) target = $region88
        $region87: #{tpu_custom_call.1} parent=79 // pred_region
          %728 = dma.done %s720, 256
        $region88: #{tpu_custom_call.1} parent=79 // pred_fallthru
          _
        %s729 = sand.u32 %s44, 1
        %s730 = scalar_lea.sflag [#allocation8], %s729
        %s731 = sand.u32 %s116, 1
        %s732 = scalar_lea.vmem [#allocation9], %s731
        // Predicated region
        $region89: #{tpu_custom_call.1} parent=79 // pred_check
          %p733 = pneg %p129
        $region90: #{tpu_custom_call.1} parent=79 // pred_check_branch
          %735 = sbr.rel (%p733) target = $region92
        $region91: #{tpu_custom_call.1} parent=79 // pred_region
          %737 = dma.done %s730, 16
        $region92: #{tpu_custom_call.1} parent=79 // pred_fallthru
          _
        %s738 = sand.u32 %s44, 1
        %s739 = scalar_lea.sflag [#allocation11], %s738
        %s740 = sand.u32 %s142, 1
        %s741 = smul.addr %s740, 16
        %s742 = scalar_lea.vmem [#allocation10], %s741
        // Predicated region
        $region93: #{tpu_custom_call.1} parent=79 // pred_check
          %p743 = pneg %p155
        $region94: #{tpu_custom_call.1} parent=79 // pred_check_branch
          %745 = sbr.rel (%p743) target = $region96
        $region95: #{tpu_custom_call.1} parent=79 // pred_region
          %747 = dma.done %s739, 256
        $region96: #{tpu_custom_call.1} parent=79 // pred_fallthru
          _
        %s748 = sand.u32 %s44, 1
        %s749 = scalar_lea.sflag [#allocation11], %s748
        %s750 = sand.u32 %s194, 1
        %s751 = smul.addr %s750, 16
        %s752 = scalar_lea.vmem [#allocation12], %s751
        // Predicated region
        $region97: #{tpu_custom_call.1} parent=79 // pred_check
          %p753 = pneg %p207
        $region98: #{tpu_custom_call.1} parent=79 // pred_check_branch
          %755 = sbr.rel (%p753) target = $region100
        $region99: #{tpu_custom_call.1} parent=79 // pred_region
          %757 = dma.done %s749, 256
        $region100: #{tpu_custom_call.1} parent=79 // pred_fallthru
          _
        %s758 = sand.u32 %s44, 1
        %s759 = scalar_lea.sflag [#allocation14], %s758
        %s760 = sand.u32 %s272, 1
        %s761 = scalar_lea.vmem [#allocation13], %s760
        // Predicated region
        $region101: #{tpu_custom_call.1} parent=79 // pred_check
          %p762 = pneg %p285
        $region102: #{tpu_custom_call.1} parent=79 // pred_check_branch
          %764 = sbr.rel (%p762) target = $region104
        $region103: #{tpu_custom_call.1} parent=79 // pred_region
          %766 = dma.done %s759, 16
        $region104: #{tpu_custom_call.1} parent=79 // pred_fallthru
          _
        %s767 = sand.u32 %s44, 1
        %s768 = scalar_lea.sflag [#allocation14], %s767
        %s769 = sand.u32 %s324, 1
        %s770 = scalar_lea.vmem [#allocation15], %s769
        // Predicated region
        $region105: #{tpu_custom_call.1} parent=79 // pred_check
          %p771 = pneg %p337
        $region106: #{tpu_custom_call.1} parent=79 // pred_check_branch
          %773 = sbr.rel (%p771) target = $region108
        $region107: #{tpu_custom_call.1} parent=79 // pred_region
          %775 = dma.done %s768, 16
        $region108: #{tpu_custom_call.1} parent=79 // pred_fallthru
          _
        %s776 = sand.u32 %s44, 1
        %s777 = scalar_lea.sflag [#allocation17], %s776
        %s778 = sand.u32 %s350, 1
        %s779 = smul.addr %s778, 16
        %s780 = scalar_lea.vmem [#allocation16], %s779
        // Predicated region
        $region109: #{tpu_custom_call.1} parent=79 // pred_check
          %p781 = pneg %p363
        $region110: #{tpu_custom_call.1} parent=79 // pred_check_branch
          %783 = sbr.rel (%p781) target = $region112
        $region111: #{tpu_custom_call.1} parent=79 // pred_region
          %785 = dma.done %s777, 256
        $region112: #{tpu_custom_call.1} parent=79 // pred_fallthru
          _
        %s786 = sand.u32 %s44, 1
        %s787 = scalar_lea.sflag [#allocation17], %s786
        %s788 = sand.u32 %s402, 1
        %s789 = smul.addr %s788, 16
        %s790 = scalar_lea.vmem [#allocation18], %s789
        // Predicated region
        $region113: #{tpu_custom_call.1} parent=79 // pred_check
          %p791 = pneg %p415
        $region114: #{tpu_custom_call.1} parent=79 // pred_check_branch
          %793 = sbr.rel (%p791) target = $region116
        $region115: #{tpu_custom_call.1} parent=79 // pred_region
          %795 = dma.done %s787, 256
        $region116: #{tpu_custom_call.1} parent=79 // pred_fallthru
          _
        %s796 = sand.u32 %s64, 1
        %s797 = scalar_lea.sflag [#allocation5], %s796
        %s798 = sand.u32 %s64, 1
        %s799 = smul.addr %s798, 8
        %s800 = scalar_lea.vmem [#allocation4], %s799
        %p801 = pneg %p77
        %p802 = pneg %p74
        %s803 = sand.u32 %s44, 1
        %s804 = scalar_lea.sflag [#allocation8], %s803
        %s805 = sand.u32 %s90, 1
        %s806 = smul.addr %s805, 16
        %s807 = scalar_lea.vmem [#allocation7], %s806
        %p808 = pneg %p103
        %p809 = pneg %p100
        %s810 = sand.u32 %s44, 1
        %s811 = scalar_lea.sflag [#allocation8], %s810
        %s812 = sand.u32 %s116, 1
        %s813 = scalar_lea.vmem [#allocation9], %s812
        %p814 = pneg %p129
        %p815 = pneg %p126
        %s816 = sand.u32 %s44, 1
        %s817 = scalar_lea.sflag [#allocation11], %s816
        %s818 = sand.u32 %s142, 1
        %s819 = smul.addr %s818, 16
        %s820 = scalar_lea.vmem [#allocation10], %s819
        %p821 = pneg %p155
        %p822 = pneg %p152
        %p823 = scmp.lt.s32.totalorder %s49, 1
        %s824 = scalar_select %p823, %s49, 1
        %s825 = scalar_lea.vmem %s4, %s824
        %p826 = pneg %p181
        %p827 = pneg %p178
        %s828 = sand.u32 %s44, 1
        %s829 = scalar_lea.sflag [#allocation11], %s828
        %s830 = sand.u32 %s194, 1
        %s831 = smul.addr %s830, 16
        %s832 = scalar_lea.vmem [#allocation12], %s831
        %p833 = pneg %p207
        %p834 = pneg %p204
        %p835 = scmp.lt.s32.totalorder %s49, 1
        %s836 = scalar_select %p835, %s49, 1
        %s837 = scalar_lea.vmem %s6, %s836
        %p838 = pneg %p233
        %p839 = pneg %p230
        %p840 = scmp.lt.s32.totalorder %s49, 1
        %s841 = scalar_select %p840, %s49, 1
        %s842 = scalar_lea.vmem %s7, %s841
        %p843 = pneg %p259
        %p844 = pneg %p256
        %s845 = sand.u32 %s44, 1
        %s846 = scalar_lea.sflag [#allocation14], %s845
        %s847 = sand.u32 %s272, 1
        %s848 = scalar_lea.vmem [#allocation13], %s847
        %p849 = pneg %p285
        %p850 = pneg %p282
        %p851 = scmp.lt.s32.totalorder %s49, 1
        %s852 = scalar_select %p851, %s49, 1
        %s853 = scalar_lea.vmem %s9, %s852
        %p854 = pneg %p311
        %p855 = pneg %p308
        %s856 = sand.u32 %s44, 1
        %s857 = scalar_lea.sflag [#allocation14], %s856
        %s858 = sand.u32 %s324, 1
        %s859 = scalar_lea.vmem [#allocation15], %s858
        %p860 = pneg %p337
        %p861 = pneg %p334
        %s862 = sand.u32 %s44, 1
        %s863 = scalar_lea.sflag [#allocation17], %s862
        %s864 = sand.u32 %s350, 1
        %s865 = smul.addr %s864, 16
        %s866 = scalar_lea.vmem [#allocation16], %s865
        %p867 = pneg %p363
        %p868 = pneg %p360
        %p869 = scmp.lt.s32.totalorder %s49, 1
        %s870 = scalar_select %p869, %s49, 1
        %s871 = scalar_lea.vmem %s12, %s870
        %p872 = pneg %p389
        %p873 = pneg %p386
        %s874 = sand.u32 %s44, 1
        %s875 = scalar_lea.sflag [#allocation17], %s874
        %s876 = sand.u32 %s402, 1
        %s877 = smul.addr %s876, 16
        %s878 = scalar_lea.vmem [#allocation18], %s877
        %p879 = pneg %p415
        %p880 = pneg %p412
        %p881 = scmp.lt.s32.totalorder %s49, 1
        %s882 = scalar_select %p881, %s49, 1
        %s883 = scalar_lea.vmem %s14, %s882
        %p884 = pneg %p441
        %p885 = pneg %p438
        %p886 = pneg %p467
        %p887 = pneg %p464
        %s888 = sand.u32 %s454, 1
        %s889 = scalar_lea.sflag [#allocation6], %s888
        %s890 = sand.u32 %s454, 1
        %s891 = smul.addr %s890, 8
        %s892 = scalar_lea.vmem [#allocation19], %s891
        %p893 = scmp.lt.s32.totalorder %s49, 1
        %s894 = scalar_select %p893, %s49, 1
        %s895 = scalar_lea.vmem %s4, %s894
        %p896 = scmp.lt.s32.totalorder %s49, 1
        %s897 = scalar_select %p896, %s49, 1
        %s898 = scalar_lea.vmem %s6, %s897
        %p899 = scmp.lt.s32.totalorder %s49, 1
        %s900 = scalar_select %p899, %s49, 1
        %s901 = scalar_lea.vmem %s7, %s900
        %p902 = scmp.lt.s32.totalorder %s49, 1
        %s903 = scalar_select %p902, %s49, 1
        %s904 = scalar_lea.vmem %s9, %s903
        %p905 = scmp.lt.s32.totalorder %s49, 1
        %s906 = scalar_select %p905, %s49, 1
        %s907 = scalar_lea.vmem %s12, %s906
        %p908 = scmp.lt.s32.totalorder %s49, 1
        %s909 = scalar_select %p908, %s49, 1
        %s910 = scalar_lea.vmem %s14, %s909
        %p912 = scmp.eq.s32.totalorder %s49, 0
        // Predicated region
        $region117: #{tpu_custom_call.1} parent=79 // pred_check
          %p913 = pneg %p912
        $region118: #{tpu_custom_call.1} parent=79 // pred_check_branch
          %915 = sbr.rel (%p913) target = $region120
        $region119: #{tpu_custom_call.1} parent=79 // pred_region
          %v916 = vld [vmem:[%s713] sm:$0xff]
          %vm917 = vcmask 261120
          %918 = vst.msk [vmem:[#allocation2] sm:$0xff] %vm917, %v916
        $region120: #{tpu_custom_call.1} parent=79 // pred_fallthru
          _
        %v919 = vld [vmem:[#allocation2] sm:$0xff]
        %v920 = vld [vmem:[%s901] sm:$0x1]
        %v921 = vld [vmem:[%s761] sm:$0x1]
        %vm922 = vcmask 261120
        %v923 = vsel %vm922, %v919, 0.0
        %924 = vadd.xlane.f32.xlu0 %v923
        %v925 = vpop.xlane.xlu0 %924
        %v926 = vrcp.pop 32.0
        %v927 = vmul.f32 32.0, %v926
        %v928 = vsub.f32 1.0, %v927
        %v929 = vmul.f32 %v926, %v928
        %v930 = vadd.f32 %v926, %v929
        %vm931 = vweird.f32 %v926
        %v932 = vsel %vm931, %v926, %v930
        %v933 = vmul.f32 %v925, %v932
        %v934 = vsub.f32 %v919, %v933
        %v935 = vmul.f32 %v934, %v934
        %v936 = vsel %vm922, %v935, 0.0
        %937 = vadd.xlane.f32.xlu0 %v936
        %v938 = vpop.xlane.xlu0 %937
        %v939 = vmul.f32 %v938, %v932
        %v940 = vadd.f32 %v939, 1e-05
        %v941 = vrsqrt.pop %v940
        %v942 = vmul.f32 %v941, %v940
        %v943 = vmul.f32 %v942, %v941
        %v944 = vmul.f32 0.5, %v943
        %v945 = vsub.f32 1.5, %v944
        %v946 = vmul.f32 %v941, %v945
        %vm947 = vweird.f32 %v940
        %vm948 = vweird.f32 %v941
        %vm949 = vmor %vm947, %vm948
        %v950 = vsel %vm949, %v941, %v946
        %v951 = vmul.f32 %v934, %v950
        %v953 = vperm.slane %v920, 0
        %v955 = vmul.f32 %v951, %v953
        %v957 = vperm.slane %v921, 0
        %v959 = vadd.f32 %v955, %v957
        %v960 = vpack.c.bf16 %v959, %v959
        %v961 = vld [vmem:[%s723] sm:$0xf]
        %v962 = vld [vmem:[%s723 + $0x4] sm:$0xf]
        %v963 = vld [vmem:[%s723 + $0x8] sm:$0xf]
        %v964 = vld [vmem:[%s723 + $0xc] sm:$0xf]
        %v965 = vld [vmem:[%s732] sm:$0x1]
        %v967 = vperm.slane %v965, 0
        %v973 = vunpack.c.l.b16 %v961
        %v974 = vunpack.c.l.b16 %v962
        %v975 = vunpack.c.l.b16 %v963
        %v976 = vunpack.c.l.b16 %v964
        %v977 = vpack.c.b16 %v974, %v973
        %v978 = vpack.c.b16 %v976, %v975
        %v982 = vsel %vm922, %v960, 0
        %984 = vmatpush.bf16.msra.mxu0 0
        %985 = vmatpush.bf16.msra.mxu0 0
        %986 = vmatpush.bf16.msra.mxu0 0
        %987 = vmatpush.bf16.msra.mxu0 0
        %988 = vmatpush.bf16.msra.mxu0 0
        %989 = vmatpush.bf16.msra.mxu0 0
        %990 = vmatpush.bf16.msra.mxu0 %v978
        %991 = vmatpush.bf16.msra.mxu0 %v977
        %992 = vmatmul.bf16.gmra.mxu0 %v982
        %v993 = vpop.f32.mrf.mxu0
        %v994 = vadd.f32 %v967, %v993
        %v995 = vpop.f32.mrf.mxu0
        %996 = vdwg.mxu0
        %v997 = vld [vmem:[%s742] sm:$0xf]
        %v998 = vld [vmem:[%s742 + $0x4] sm:$0xf]
        %v999 = vld [vmem:[%s742 + $0x8] sm:$0xf]
        %v1000 = vld [vmem:[%s742 + $0xc] sm:$0xf]
        %v1001 = vld [vmem:[%s895] sm:$0x1]
        %v1003 = vperm.slane %v1001, 0
        %v1009 = vunpack.c.l.b16 %v997
        %v1010 = vunpack.c.l.b16 %v998
        %v1011 = vunpack.c.l.b16 %v999
        %v1012 = vunpack.c.l.b16 %v1000
        %v1013 = vpack.c.b16 %v1010, %v1009
        %v1014 = vpack.c.b16 %v1012, %v1011
        %1017 = vmatpush.bf16.msra.mxu0 0
        %1018 = vmatpush.bf16.msra.mxu0 0
        %1019 = vmatpush.bf16.msra.mxu0 0
        %1020 = vmatpush.bf16.msra.mxu0 0
        %1021 = vmatpush.bf16.msra.mxu0 0
        %1022 = vmatpush.bf16.msra.mxu0 0
        %1023 = vmatpush.bf16.msra.mxu0 %v1014
        %1024 = vmatpush.bf16.msra.mxu0 %v1013
        %1025 = vmatmul.bf16.gmra.mxu0 %v982
        %v1026 = vpop.f32.mrf.mxu0
        %v1027 = vadd.f32 %v1003, %v1026
        %v1028 = vpop.f32.mrf.mxu0
        %1029 = vdwg.mxu0
        %v1030 = vld [vmem:[%s752] sm:$0xf]
        %v1031 = vld [vmem:[%s752 + $0x4] sm:$0xf]
        %v1032 = vld [vmem:[%s752 + $0x8] sm:$0xf]
        %v1033 = vld [vmem:[%s752 + $0xc] sm:$0xf]
        %v1034 = vld [vmem:[%s898] sm:$0x1]
        %v1036 = vperm.slane %v1034, 0
        %v1042 = vunpack.c.l.b16 %v1030
        %v1043 = vunpack.c.l.b16 %v1031
        %v1044 = vunpack.c.l.b16 %v1032
        %v1045 = vunpack.c.l.b16 %v1033
        %v1046 = vpack.c.b16 %v1043, %v1042
        %v1047 = vpack.c.b16 %v1045, %v1044
        %1050 = vmatpush.bf16.msra.mxu0 0
        %1051 = vmatpush.bf16.msra.mxu0 0
        %1052 = vmatpush.bf16.msra.mxu0 0
        %1053 = vmatpush.bf16.msra.mxu0 0
        %1054 = vmatpush.bf16.msra.mxu0 0
        %1055 = vmatpush.bf16.msra.mxu0 0
        %1056 = vmatpush.bf16.msra.mxu0 %v1047
        %1057 = vmatpush.bf16.msra.mxu0 %v1046
        %1058 = vmatmul.bf16.gmra.mxu0 %v982
        %v1059 = vpop.f32.mrf.mxu0
        %v1060 = vadd.f32 %v1036, %v1059
        %v1061 = vpop.f32.mrf.mxu0
        %1062 = vdwg.mxu0
        %v1063 = vpack.c.bf16 %v994, %v994
        %v1064 = vpack.c.bf16 %v1027, %v1027
        %v1065 = vpack.c.bf16 %v1060, %v1060
        %1066 = vst.msk [vmem:[#allocation3] sm:$0xff] %vm922, %v919
        %vm1067 = vcmask 64512
        %v1069 = vsel %vm1067, %v1063, 0
        %v1072 = vsel %vm1067, %v1064, 0
        %1074 = vmatpush.bf16.xpose.msra.mxu0 0
        %1075 = vmatpush.bf16.xpose.msra.mxu0 0
        %1076 = vmatpush.bf16.xpose.msra.mxu0 0
        %1077 = vmatpush.bf16.xpose.msra.mxu0 0
        %1078 = vmatpush.bf16.xpose.msra.mxu0 0
        %1079 = vmatpush.bf16.xpose.msra.mxu0 0
        %1080 = vmatpush.bf16.xpose.msra.mxu0 0
        %1081 = vmatpush.bf16.xpose.msra.mxu0 %v1072
        %1082 = vmatmul.bf16.gmra.mxu0 %v1069
        %v1083 = vpop.f32.mrf.mxu0
        %v1084 = vadd.f32 0.0, %v1083
        %v1085 = vpop.f32.mrf.mxu0
        %1086 = vdwg.mxu0
        %v1087 = vsel %vm1067, %v1084, -inf
        %1088 = vmax.xlane.f32.xlu0 %v1087
        %v1089 = vpop.xlane.xlu0 %1088
        %v1090 = vsub.f32 %v1084, %v1089
        %v1091 = vmul.f32 %v1090, 1.442695
        %v1092 = vpow.pop %v1091
        %v1093 = vsel %vm1067, %v1092, 0.0
        %1094 = vadd.xlane.f32.xlu0 %v1093
        %v1095 = vpop.xlane.xlu0 %1094
        %v1096 = vrcp.pop %v1095
        %v1097 = vmul.f32 %v1092, %v1096
        %v1098 = vpack.c.bf16 %v1097, %v1097
        %v1100 = vsel %vm1067, %v1098, 0
        %vm1102 = vcmask 1043456
        %v1104 = vsel %vm1102, %v1065, 0
        %1106 = vmatpush.bf16.msra.mxu0 0
        %1107 = vmatpush.bf16.msra.mxu0 0
        %1108 = vmatpush.bf16.msra.mxu0 0
        %1109 = vmatpush.bf16.msra.mxu0 0
        %1110 = vmatpush.bf16.msra.mxu0 0
        %1111 = vmatpush.bf16.msra.mxu0 0
        %1112 = vmatpush.bf16.msra.mxu0 0
        %1113 = vmatpush.bf16.msra.mxu0 %v1104
        %1114 = vmatmul.bf16.gmra.mxu0 %v1100
        %v1115 = vpop.f32.mrf.mxu0
        %v1116 = vadd.f32 0.0, %v1115
        %v1117 = vpop.f32.mrf.mxu0
        %1118 = vdwg.mxu0
        %v1119 = vld [vmem:[#allocation3] sm:$0xff]
        %v1120 = vadd.f32 %v1119, %v1116
        %1121 = vst.msk [vmem:[#allocation3] sm:$0xff] %vm1067, %v1120
        %v1123 = vunpack.c.l.b16 %v1063
        %v1124 = vpack.c.b16 %v1123, %v1123
        %1125 = vrot.lane.b32.xlu0 %v1124, 120
        %v1126 = vpop.permute.xlu0 %1125
        %v1128 = vunpack.c.l.b16 %v1064
        %v1129 = vpack.c.b16 %v1128, %v1128
        %1130 = vrot.lane.b32.xlu0 %v1129, 120
        %v1131 = vpop.permute.xlu0 %1130
        %v1133 = vsel %vm1067, %v1126, 0
        %v1136 = vsel %vm1067, %v1131, 0
        %1138 = vmatpush.bf16.xpose.msra.mxu0 0
        %1139 = vmatpush.bf16.xpose.msra.mxu0 0
        %1140 = vmatpush.bf16.xpose.msra.mxu0 0
        %1141 = vmatpush.bf16.xpose.msra.mxu0 0
        %1142 = vmatpush.bf16.xpose.msra.mxu0 0
        %1143 = vmatpush.bf16.xpose.msra.mxu0 0
        %1144 = vmatpush.bf16.xpose.msra.mxu0 0
        %1145 = vmatpush.bf16.xpose.msra.mxu0 %v1136
        %1146 = vmatmul.bf16.gmra.mxu0 %v1133
        %v1147 = vpop.f32.mrf.mxu0
        %v1148 = vadd.f32 0.0, %v1147
        %v1149 = vpop.f32.mrf.mxu0
        %1150 = vdwg.mxu0
        %v1151 = vsel %vm1067, %v1148, -inf
        %1152 = vmax.xlane.f32.xlu0 %v1151
        %v1153 = vpop.xlane.xlu0 %1152
        %v1154 = vsub.f32 %v1148, %v1153
        %v1155 = vmul.f32 %v1154, 1.442695
        %v1156 = vpow.pop %v1155
        %v1157 = vsel %vm1067, %v1156, 0.0
        %1158 = vadd.xlane.f32.xlu0 %v1157
        %v1159 = vpop.xlane.xlu0 %1158
        %v1160 = vrcp.pop %v1159
        %v1161 = vmul.f32 %v1156, %v1160
        %v1162 = vpack.c.bf16 %v1161, %v1161
        %v1164 = vunpack.c.l.b16 %v1065
        %v1165 = vpack.c.b16 %v1164, %v1164
        %1166 = vrot.lane.b32.xlu0 %v1165, 120
        %v1167 = vpop.permute.xlu0 %1166
        %v1169 = vsel %vm1067, %v1162, 0
        %v1172 = vsel %vm1102, %v1167, 0
        %1174 = vmatpush.bf16.msra.mxu0 0
        %1175 = vmatpush.bf16.msra.mxu0 0
        %1176 = vmatpush.bf16.msra.mxu0 0
        %1177 = vmatpush.bf16.msra.mxu0 0
        %1178 = vmatpush.bf16.msra.mxu0 0
        %1179 = vmatpush.bf16.msra.mxu0 0
        %1180 = vmatpush.bf16.msra.mxu0 0
        %1181 = vmatpush.bf16.msra.mxu0 %v1172
        %1182 = vmatmul.bf16.gmra.mxu0 %v1169
        %v1183 = vpop.f32.mrf.mxu0
        %v1184 = vadd.f32 0.0, %v1183
        %v1185 = vpop.f32.mrf.mxu0
        %1186 = vdwg.mxu0
        %v1187 = vld [vmem:[#allocation3] sm:$0xff]
        %1189 = vrot.lane.b32.xlu0 %v1184, 8
        %v1190 = vpop.permute.xlu0 %1189
        %v1192 = vadd.f32 %v1187, %v1190
        %vm1193 = vcmask 130112
        %1194 = vst.msk [vmem:[#allocation3] sm:$0xff] %vm1193, %v1192
        %1195 = vrot.lane.b32.xlu0 %v1124, 112
        %v1196 = vpop.permute.xlu0 %1195
        %1197 = vrot.lane.b32.xlu0 %v1129, 112
        %v1198 = vpop.permute.xlu0 %1197
        %v1200 = vsel %vm1067, %v1196, 0
        %v1203 = vsel %vm1067, %v1198, 0
        %1205 = vmatpush.bf16.xpose.msra.mxu0 0
        %1206 = vmatpush.bf16.xpose.msra.mxu0 0
        %1207 = vmatpush.bf16.xpose.msra.mxu0 0
        %1208 = vmatpush.bf16.xpose.msra.mxu0 0
        %1209 = vmatpush.bf16.xpose.msra.mxu0 0
        %1210 = vmatpush.bf16.xpose.msra.mxu0 0
        %1211 = vmatpush.bf16.xpose.msra.mxu0 0
        %1212 = vmatpush.bf16.xpose.msra.mxu0 %v1203
        %1213 = vmatmul.bf16.gmra.mxu0 %v1200
        %v1214 = vpop.f32.mrf.mxu0
        %v1215 = vadd.f32 0.0, %v1214
        %v1216 = vpop.f32.mrf.mxu0
        %1217 = vdwg.mxu0
        %v1218 = vsel %vm1067, %v1215, -inf
        %1219 = vmax.xlane.f32.xlu0 %v1218
        %v1220 = vpop.xlane.xlu0 %1219
        %v1221 = vsub.f32 %v1215, %v1220
        %v1222 = vmul.f32 %v1221, 1.442695
        %v1223 = vpow.pop %v1222
        %v1224 = vsel %vm1067, %v1223, 0.0
        %1225 = vadd.xlane.f32.xlu0 %v1224
        %v1226 = vpop.xlane.xlu0 %1225
        %v1227 = vrcp.pop %v1226
        %v1228 = vmul.f32 %v1223, %v1227
        %v1229 = vpack.c.bf16 %v1228, %v1228
        %1230 = vrot.lane.b32.xlu0 %v1165, 112
        %v1231 = vpop.permute.xlu0 %1230
        %v1233 = vsel %vm1067, %v1229, 0
        %v1236 = vsel %vm1102, %v1231, 0
        %1238 = vmatpush.bf16.msra.mxu0 0
        %1239 = vmatpush.bf16.msra.mxu0 0
        %1240 = vmatpush.bf16.msra.mxu0 0
        %1241 = vmatpush.bf16.msra.mxu0 0
        %1242 = vmatpush.bf16.msra.mxu0 0
        %1243 = vmatpush.bf16.msra.mxu0 0
        %1244 = vmatpush.bf16.msra.mxu0 0
        %1245 = vmatpush.bf16.msra.mxu0 %v1236
        %1246 = vmatmul.bf16.gmra.mxu0 %v1233
        %v1247 = vpop.f32.mrf.mxu0
        %v1248 = vadd.f32 0.0, %v1247
        %v1249 = vpop.f32.mrf.mxu0
        %1250 = vdwg.mxu0
        %v1251 = vld [vmem:[#allocation3] sm:$0xff]
        %1253 = vrot.lane.b32.xlu0 %v1248, 16
        %v1254 = vpop.permute.xlu0 %1253
        %v1256 = vadd.f32 %v1251, %v1254
        %vm1257 = vcmask 195712
        %1258 = vst.msk [vmem:[#allocation3] sm:$0xff] %vm1257, %v1256
        %1259 = vrot.lane.b32.xlu0 %v1124, 104
        %v1260 = vpop.permute.xlu0 %1259
        %1261 = vrot.lane.b32.xlu0 %v1129, 104
        %v1262 = vpop.permute.xlu0 %1261
        %v1264 = vsel %vm1067, %v1260, 0
        %v1267 = vsel %vm1067, %v1262, 0
        %1269 = vmatpush.bf16.xpose.msra.mxu0 0
        %1270 = vmatpush.bf16.xpose.msra.mxu0 0
        %1271 = vmatpush.bf16.xpose.msra.mxu0 0
        %1272 = vmatpush.bf16.xpose.msra.mxu0 0
        %1273 = vmatpush.bf16.xpose.msra.mxu0 0
        %1274 = vmatpush.bf16.xpose.msra.mxu0 0
        %1275 = vmatpush.bf16.xpose.msra.mxu0 0
        %1276 = vmatpush.bf16.xpose.msra.mxu0 %v1267
        %1277 = vmatmul.bf16.gmra.mxu0 %v1264
        %v1278 = vpop.f32.mrf.mxu0
        %v1279 = vadd.f32 0.0, %v1278
        %v1280 = vpop.f32.mrf.mxu0
        %1281 = vdwg.mxu0
        %v1282 = vsel %vm1067, %v1279, -inf
        %1283 = vmax.xlane.f32.xlu0 %v1282
        %v1284 = vpop.xlane.xlu0 %1283
        %v1285 = vsub.f32 %v1279, %v1284
        %v1286 = vmul.f32 %v1285, 1.442695
        %v1287 = vpow.pop %v1286
        %v1288 = vsel %vm1067, %v1287, 0.0
        %1289 = vadd.xlane.f32.xlu0 %v1288
        %v1290 = vpop.xlane.xlu0 %1289
        %v1291 = vrcp.pop %v1290
        %v1292 = vmul.f32 %v1287, %v1291
        %v1293 = vpack.c.bf16 %v1292, %v1292
        %1294 = vrot.lane.b32.xlu0 %v1165, 104
        %v1295 = vpop.permute.xlu0 %1294
        %v1297 = vsel %vm1067, %v1293, 0
        %v1300 = vsel %vm1102, %v1295, 0
        %1302 = vmatpush.bf16.msra.mxu0 0
        %1303 = vmatpush.bf16.msra.mxu0 0
        %1304 = vmatpush.bf16.msra.mxu0 0
        %1305 = vmatpush.bf16.msra.mxu0 0
        %1306 = vmatpush.bf16.msra.mxu0 0
        %1307 = vmatpush.bf16.msra.mxu0 0
        %1308 = vmatpush.bf16.msra.mxu0 0
        %1309 = vmatpush.bf16.msra.mxu0 %v1300
        %1310 = vmatmul.bf16.gmra.mxu0 %v1297
        %v1311 = vpop.f32.mrf.mxu0
        %v1312 = vadd.f32 0.0, %v1311
        %v1313 = vpop.f32.mrf.mxu0
        %1314 = vdwg.mxu0
        %v1315 = vld [vmem:[#allocation3] sm:$0xff]
        %1317 = vrot.lane.b32.xlu0 %v1312, 24
        %v1318 = vpop.permute.xlu0 %1317
        %v1320 = vadd.f32 %v1315, %v1318
        %vm1321 = vcmask 261312
        %1322 = vst.msk [vmem:[#allocation3] sm:$0xff] %vm1321, %v1320
        %v1323 = vld [vmem:[#allocation3] sm:$0xff]
        %v1324 = vld [vmem:[%s904] sm:$0x1]
        %v1325 = vld [vmem:[%s770] sm:$0x1]
        %v1326 = vsel %vm922, %v1323, 0.0
        %1327 = vadd.xlane.f32.xlu0 %v1326
        %v1328 = vpop.xlane.xlu0 %1327
        %v1329 = vmul.f32 %v1328, %v932
        %v1330 = vsub.f32 %v1323, %v1329
        %v1331 = vmul.f32 %v1330, %v1330
        %v1332 = vsel %vm922, %v1331, 0.0
        %1333 = vadd.xlane.f32.xlu0 %v1332
        %v1334 = vpop.xlane.xlu0 %1333
        %v1335 = vmul.f32 %v1334, %v932
        %v1336 = vadd.f32 %v1335, 1e-05
        %v1337 = vrsqrt.pop %v1336
        %v1338 = vmul.f32 %v1337, %v1336
        %v1339 = vmul.f32 %v1338, %v1337
        %v1340 = vmul.f32 0.5, %v1339
        %v1341 = vsub.f32 1.5, %v1340
        %v1342 = vmul.f32 %v1337, %v1341
        %vm1343 = vweird.f32 %v1336
        %vm1344 = vweird.f32 %v1337
        %vm1345 = vmor %vm1343, %vm1344
        %v1346 = vsel %vm1345, %v1337, %v1342
        %v1347 = vmul.f32 %v1330, %v1346
        %v1349 = vperm.slane %v1324, 0
        %v1351 = vmul.f32 %v1347, %v1349
        %v1353 = vperm.slane %v1325, 0
        %v1355 = vadd.f32 %v1351, %v1353
        %v1356 = vpack.c.bf16 %v1355, %v1355
        %v1357 = vld [vmem:[%s780] sm:$0xf]
        %v1358 = vld [vmem:[%s780 + $0x4] sm:$0xf]
        %v1359 = vld [vmem:[%s780 + $0x8] sm:$0xf]
        %v1360 = vld [vmem:[%s780 + $0xc] sm:$0xf]
        %v1361 = vld [vmem:[%s907] sm:$0x1]
        %v1363 = vperm.slane %v1361, 0
        %v1369 = vunpack.c.l.b16 %v1357
        %v1370 = vunpack.c.l.b16 %v1358
        %v1371 = vunpack.c.l.b16 %v1359
        %v1372 = vunpack.c.l.b16 %v1360
        %v1373 = vpack.c.b16 %v1370, %v1369
        %v1374 = vpack.c.b16 %v1372, %v1371
        %v1378 = vsel %vm922, %v1356, 0
        %1380 = vmatpush.bf16.msra.mxu0 0
        %1381 = vmatpush.bf16.msra.mxu0 0
        %1382 = vmatpush.bf16.msra.mxu0 0
        %1383 = vmatpush.bf16.msra.mxu0 0
        %1384 = vmatpush.bf16.msra.mxu0 0
        %1385 = vmatpush.bf16.msra.mxu0 0
        %1386 = vmatpush.bf16.msra.mxu0 %v1374
        %1387 = vmatpush.bf16.msra.mxu0 %v1373
        %1388 = vmatmul.bf16.gmra.mxu0 %v1378
        %v1389 = vpop.f32.mrf.mxu0
        %v1390 = vadd.f32 %v1363, %v1389
        %v1391 = vpop.f32.mrf.mxu0
        %1392 = vdwg.mxu0
        %v1393 = vmul.f32 %v1390, 0.5
        %v1394 = vmul.f32 %v1390, 0.70710677
        %v1395 = vmul.f32 %v1394, %v1394
        %v1396 = vmin.f32 16.0, %v1395
        %v1397 = vmul.f32 %v1396, 2.1237322e-06
        %v1398 = vadd.f32 %v1397, 0.00028619796
        %v1399 = vmul.f32 %v1396, %v1398
        %v1400 = vadd.f32 %v1399, 0.0036580483
        %v1401 = vmul.f32 %v1396, %v1400
        %v1402 = vadd.f32 %v1401, 0.05243302
        %v1403 = vmul.f32 %v1396, %v1402
        %v1404 = vadd.f32 %v1403, 0.18741608
        %v1405 = vmul.f32 %v1396, %v1404
        %v1406 = vadd.f32 %v1405, 1.1283791
        %v1407 = vmul.f32 %v1394, %v1406
        %v1408 = vmul.f32 %v1396, 3.8918573e-05
        %v1409 = vadd.f32 %v1408, 0.001143296
        %v1410 = vmul.f32 %v1396, %v1409
        %v1411 = vadd.f32 %v1410, 0.014752088
        %v1412 = vmul.f32 %v1396, %v1411
        %v1413 = vadd.f32 %v1412, 0.112945676
        %v1414 = vmul.f32 %v1396, %v1413
        %v1415 = vadd.f32 %v1414, 0.4994258
        %v1416 = vmul.f32 %v1396, %v1415
        %v1417 = vadd.f32 %v1416, 1.0
        %v1418 = vrcp.pop %v1417
        %v1419 = vmul.f32 %v1417, %v1418
        %v1420 = vsub.f32 1.0, %v1419
        %v1421 = vmul.f32 %v1418, %v1420
        %v1422 = vadd.f32 %v1418, %v1421
        %vm1423 = vweird.f32 %v1417
        %vm1424 = vweird.f32 %v1418
        %vm1425 = vmor %vm1423, %vm1424
        %v1426 = vsel %vm1425, %v1418, %v1422
        %v1427 = vand.u32 2147483647, %v1417
        %vm1428 = vcmp.eq.f32.partialorder %v1427, 8.507059e+37
        %v1429 = vand.u32 %v1417, 2147483648
        %v1430 = vor.u32 1.1754944e-38, %v1429
        %v1431 = vsel %vm1428, %v1430, %v1426
        %v1432 = vmul.f32 %v1407, %v1431
        %v1433 = vmin.f32 %v1432, 1.0
        %v1434 = vmax.f32 %v1433, -1.0
        %v1435 = vadd.f32 %v1434, 1.0
        %v1436 = vmul.f32 %v1393, %v1435
        %v1437 = vpack.c.bf16 %v1436, %v1436
        %v1438 = vld [vmem:[%s790] sm:$0xf]
        %v1439 = vld [vmem:[%s790 + $0x4] sm:$0xf]
        %v1440 = vld [vmem:[%s790 + $0x8] sm:$0xf]
        %v1441 = vld [vmem:[%s790 + $0xc] sm:$0xf]
        %v1442 = vld [vmem:[%s910] sm:$0x1]
        %v1444 = vperm.slane %v1442, 0
        %v1450 = vunpack.c.l.b16 %v1438
        %v1451 = vunpack.c.l.b16 %v1439
        %v1452 = vunpack.c.l.b16 %v1440
        %v1453 = vunpack.c.l.b16 %v1441
        %v1454 = vpack.c.b16 %v1451, %v1450
        %v1455 = vpack.c.b16 %v1453, %v1452
        %v1459 = vsel %vm922, %v1437, 0
        %1461 = vmatpush.bf16.msra.mxu0 0
        %1462 = vmatpush.bf16.msra.mxu0 0
        %1463 = vmatpush.bf16.msra.mxu0 0
        %1464 = vmatpush.bf16.msra.mxu0 0
        %1465 = vmatpush.bf16.msra.mxu0 0
        %1466 = vmatpush.bf16.msra.mxu0 0
        %1467 = vmatpush.bf16.msra.mxu0 %v1455
        %1468 = vmatpush.bf16.msra.mxu0 %v1454
        %1469 = vmatmul.bf16.gmra.mxu0 %v1459
        %v1470 = vpop.f32.mrf.mxu0
        %v1471 = vadd.f32 %v1444, %v1470
        %v1472 = vpop.f32.mrf.mxu0
        %1473 = vdwg.mxu0
        %v1474 = vadd.f32 %v1471, %v1323
        %1475 = vst.msk [vmem:[#allocation2] sm:$0xff] %vm922, %v1474
        %p1476 = scmp.eq.s32.totalorder %s49, 1
        // Predicated region
        $region121: #{tpu_custom_call.1} parent=79 // pred_check
          %p1477 = pneg %p1476
        $region122: #{tpu_custom_call.1} parent=79 // pred_check_branch
          %1479 = sbr.rel (%p1477) target = $region124
        $region123: #{tpu_custom_call.1} parent=79 // pred_region
          %1480 = vst.msk [vmem:[%s892] sm:$0xff] %vm922, %v1474
        $region124: #{tpu_custom_call.1} parent=79 // pred_fallthru
          _
        %s1481 = sand.u32 %s454, 1
        %s1482 = scalar_lea.sflag [#allocation6], %s1481
        %s1483 = sand.u32 %s454, 1
        %s1484 = smul.addr %s1483, 8
        %s1485 = scalar_lea.vmem [#allocation19], %s1484
        // Predicated region
        $region125: #{tpu_custom_call.1} parent=79 // pred_check
          %p1486 = pneg %p464
        $region126: #{tpu_custom_call.1} parent=79 // pred_check_branch
          %1488 = sbr.rel (%p1486) target = $region128
        $region127: #{tpu_custom_call.1} parent=79 // pred_region
          %1490 = vsyncadd %s1482, 0
          %s1491 = smul.addr %s48, 8
          %s1492 = scalar_lea.hbm %s15, %s1491
          %s1494 = sshll.u32 %s1485, 4
          %s1495 = int_to_ptr.vmem [resolvable:$true] %s1494
          %s1496 = sshll.u32 %s1492, 4
          %s1497 = int_to_ptr.hbm [resolvable:$true] %s1496
          %1499 = dma.vmem_to_hbm [thread:$0]  %s1495, 128, %s1497, %s1482
        $region128: #{tpu_custom_call.1} parent=79 // pred_fallthru
          _
      $region80: #{tpu_custom_call.1} parent=5 // pred_fallthru
        _
      %p1500 = scmp.le.s32.totalorder 2, %s39
      // Predicated region
      $region129: #{tpu_custom_call.1} parent=5 // pred_check
        %p1501 = pneg %p1500
      $region130: #{tpu_custom_call.1} parent=5 // pred_check_branch
        %1503 = sbr.rel (%p1501) target = $region132
      $region131: #{tpu_custom_call.1} parent=5 // pred_region
        %s1504 = ssub.s32 %s39, 2
        // Predicated region
        $region133: #{tpu_custom_call.1} parent=131 // pred_check
          %p1505 = pneg %p470
        $region134: #{tpu_custom_call.1} parent=131 // pred_check_branch
          %1507 = sbr.rel (%p1505) target = $region136
        $region135: #{tpu_custom_call.1} parent=131 // pred_region
          %s1508 = sand.u32 %s455, 1
          %s1509 = scalar_lea.sflag [#allocation6], %s1508
          %s1510 = sand.u32 %s455, 1
          %s1511 = smul.addr %s1510, 8
          %s1512 = scalar_lea.vmem [#allocation19], %s1511
          %1514 = dma.done %s1509, 128
        $region136: #{tpu_custom_call.1} parent=131 // pred_fallthru
          _
      $region132: #{tpu_custom_call.1} parent=5 // pred_fallthru
        _
    $region6: #{tpu_custom_call.1} parent=1 // loop_footer
      %s43 = sadd.s32 1, %s39
    $region7: #{tpu_custom_call.1} parent=1 // loop_footer_branch
      %38 = sbr.rel target = $region3
    $region8: #{tpu_custom_call.1} parent=1 // loop_exit
      _
    %1515 = vsyncpa [#allocation5], 1
    %s1516 = scalar_lea.sflag [#allocation5], 1
    %1517 = vsyncpa %s1516, 1
    %1518 = vsyncpa [#allocation8], 1
    %s1519 = scalar_lea.sflag [#allocation8], 1
    %1520 = vsyncpa %s1519, 1
    %1521 = vsyncpa [#allocation11], 1
    %s1522 = scalar_lea.sflag [#allocation11], 1
    %1523 = vsyncpa %s1522, 1
    %1524 = vsyncpa [#allocation14], 1
    %s1525 = scalar_lea.sflag [#allocation14], 1
    %1526 = vsyncpa %s1525, 1
    %1527 = vsyncpa [#allocation17], 1
    %s1528 = scalar_lea.sflag [#allocation17], 1
    %1529 = vsyncpa %s1528, 1
    %1530 = vsyncpa [#allocation6], 1
    %s1531 = scalar_lea.sflag [#allocation6], 1
    %1532 = vsyncpa %s1531, 1

</llo_original>
